<compile_context>
chip_gen: v7x
topology: tpu7x:2x2x1
jax: 0.10.0
libtpu: 0.0.40
codegen_flags: <defaults>
</compile_context>

<pallas_src>
import jax
import jax.numpy as jnp
from jax import lax
from jax.experimental import pallas as pl
from jax.experimental.pallas import tpu as pltpu


# --------------------------------------------------------------------------- #
# Fused kernel: one (batch, row-tile) grid step.
# --------------------------------------------------------------------------- #
def _make_resnet_block_kernel(TH, W, C):
    S = TH + 2       # conv1 rows per tile: TH output rows + 1 halo row each side
    K3 = 3 * C       # the 3 kw taps folded into the matmul K dimension

    def col_taps(z):
        """(rows, W, C) -> (rows, W, 3C): lane-concat of the 3 column taps
        [col-1 (reflect), col, col+1 (reflect)] so kw lives on the K axis."""
        left = jnp.concatenate([z[:, 1:2], z[:, :W - 1]], axis=1)        # x[:,-1]=x[:,1]
        right = jnp.concatenate([z[:, 1:W], z[:, W - 2:W - 1]], axis=1)  # x[:,W]=x[:,W-2]
        return jnp.concatenate([left, z, right], axis=-1)

    def kernel(xt_ref, xc_ref, xb_ref, w1_ref, b1_ref, w2_ref, b2_ref, o_ref):
        r = pl.program_id(1)
        last_r = pl.num_programs(1) - 1
        cdt = w1_ref.dtype

        # (TH+4, W, C) row slab: 2 halo rows above + TH tile rows + 2 below.
        # At the image top/bottom the halo blocks are CLAMPED copies of the
        # first/last two rows: the inner clamped halo row is exactly the
        # reflection conv1 needs (x[-1]=x[1], x[H]=x[H-2]); the outer one is
        # garbage but only feeds the y halo rows that are overwritten by the
        # in-kernel y reflection below.  Keep those two pieces in sync.
        xslab = jnp.concatenate([xt_ref[0], xc_ref[0], xb_ref[0]],
                                axis=0).astype(cdt)

        b1 = b1_ref[...].astype(jnp.float32)            # (1, C)
        b2 = b2_ref[...].astype(jnp.float32)

        # ---- conv1 + bias + ReLU over the S-row slab (3 dots, K = 3C) ------ #
        lhs1 = col_taps(xslab)                          # (TH+4, W, 3C)
        acc1 = jnp.dot(lhs1[0:S].reshape(S * W, K3), w1_ref[0],
                       preferred_element_type=jnp.float32)
        for kh in (1, 2):
            acc1 += jnp.dot(lhs1[kh:kh + S].reshape(S * W, K3), w1_ref[kh],
                            preferred_element_type=jnp.float32)
        y = jnp.maximum(acc1 + b1, 0.0).astype(cdt).reshape(S, W, C)

        # ---- reflection re-pad of y rows at the image boundary ------------- #
        # Slab row 0 holds y[r*TH-1]; at the image top it must be the
        # reflection y[1] (= slab row 2).  Symmetric at the bottom
        # (y[H] = y[H-2] = slab row TH-1).
        top = jnp.where(r == 0, y[2], y[0])
        bot = jnp.where(r == last_r, y[TH - 1], y[TH + 1])
        y = jnp.concatenate([top[None], y[1:TH + 1], bot[None]], axis=0)

        # ---- conv2 + bias + residual over the TH-row output slab ----------- #
        lhs2 = col_taps(y)                              # (TH+2, W, 3C)
        acc2 = jnp.dot(lhs2[0:TH].reshape(TH * W, K3), w2_ref[0],
                       preferred_element_type=jnp.float32)
        for kh in (1, 2):
            acc2 += jnp.dot(lhs2[kh:kh + TH].reshape(TH * W, K3), w2_ref[kh],
                            preferred_element_type=jnp.float32)
        # Residual read from the same x block, at input precision.
        out = (acc2 + b2).reshape(TH, W, C) + xc_ref[0].astype(jnp.float32)
        o_ref[0] = out.astype(o_ref.dtype)

    return kernel


def _const_block_spec(block_shape, index_map):
    """BlockSpec for grid-invariant operands (weights / bias): single-buffered
    (double-buffering a block whose index never changes wastes VMEM)."""
    if hasattr(pl, "Buffered"):
        try:
            return pl.BlockSpec(block_shape, index_map,
                                pipeline_mode=pl.Buffered(buffer_count=1))
        except TypeError:
            pass
    return pl.BlockSpec(block_shape, index_map)


# --------------------------------------------------------------------------- #
# Wrapper (NHWC, channels-last so C maps to lanes).
# --------------------------------------------------------------------------- #
def resnet_block_forward(x_nhwc, params, *, row_tile=16,
                         compute_dtype=jnp.bfloat16,
                         vmem_limit_bytes=64 * 1024 * 1024):
    """Fused ResnetBlock forward. x_nhwc: (N, H, W, C)."""
    N, H, W, C = x_nhwc.shape
    TH = row_tile
    if TH < 2 or TH % 2 != 0 or H % TH != 0:
        raise ValueError("row_tile must be even, >= 2, and divide H")
    if H < 2 or W < 2:
        raise ValueError("H and W must be >= 2 for 3x3 reflection padding")
    R = H // TH
    half = TH // 2
    Rb = H // 2                      # number of 2-row halo blocks along H

    # Weights (kh, kw, Cin, Cout) -> (kh, kw*Cin, Cout): per kh, one (3C, C)
    # MXU operand matching the lane-concatenated lhs built by col_taps.
    w1 = params["w1"].astype(compute_dtype).reshape(3, 3 * C, C)
    w2 = params["w2"].astype(compute_dtype).reshape(3, 3 * C, C)
    b1 = params["b1"].astype(jnp.float32)
    b2 = params["b2"].astype(jnp.float32)

    kernel = _make_resnet_block_kernel(TH, W, C)

    # Clamped-index 2-row halo blocks of the SAME x array (no padded HBM copy).
    top_map = lambda n, r: (n, jnp.maximum(r * half - 1, 0), 0, 0)
    bot_map = lambda n, r: (n, jnp.minimum((r + 1) * half, Rb - 1), 0, 0)

    # TODO(synk): for production channel counts (C >= 512, v7x 64 MiB/TC) add a
    #             Cin-reduction grid axis with fp32 VMEM accumulators (weights
    #             then need not be fully VMEM-resident), and a W-tile grid axis
    #             (1-column halo) for very large W.
    return pl.pallas_call(
        kernel,
        out_shape=jax.ShapeDtypeStruct((N, H, W, C), x_nhwc.dtype),
        grid=(N, R),
        in_specs=[
            pl.BlockSpec((1, 2, W, C), top_map),                        # top halo rows
            pl.BlockSpec((1, TH, W, C), lambda n, r: (n, r, 0, 0)),     # tile rows + residual
            pl.BlockSpec((1, 2, W, C), bot_map),                        # bottom halo rows
            _const_block_spec((3, 3 * C, C), lambda n, r: (0, 0, 0)),   # w1
            _const_block_spec((1, C), lambda n, r: (0, 0)),             # b1
            _const_block_spec((3, 3 * C, C), lambda n, r: (0, 0, 0)),   # w2
            _const_block_spec((1, C), lambda n, r: (0, 0)),             # b2
        ],
        out_specs=pl.BlockSpec((1, TH, W, C), lambda n, r: (n, r, 0, 0)),
        compiler_params=pltpu.CompilerParams(
            # Both grid axes produce independent output tiles.  On v7x keep
            # R = H/TH >= 2 (ideally even) so batch=1 still splits across the
            # 2 TensorCores; VMEM is budgeted per core (64 MiB each).
            dimension_semantics=("parallel", "parallel"),
            vmem_limit_bytes=vmem_limit_bytes),
    )(x_nhwc, x_nhwc, x_nhwc, w1, b1, w2, b2)


# --------------------------------------------------------------------------- #
# Parameter setup (spectral norm as deterministic weight reparameterization)
# and pure-JAX reference.
# --------------------------------------------------------------------------- #
def _spectral_normalize(w_oihw, n_iter=50):
    wm = w_oihw.reshape(w_oihw.shape[0], -1)
    u = jnp.ones((wm.shape[0],), jnp.float32) / jnp.sqrt(float(wm.shape[0]))
    v = wm.T @ u
    for _ in range(n_iter):
        v = wm.T @ u
        v = v / (jnp.linalg.norm(v) + 1e-12)
        u = wm @ v
        u = u / (jnp.linalg.norm(u) + 1e-12)
    sigma = u @ (wm @ v)
    return w_oihw / sigma


def init_params(key, dim, k=3):
    k1, k2, k3, k4 = jax.random.split(key, 4)
    fan_in = dim * k * k
    bound = 1.0 / (fan_in ** 0.5)
    w1 = jax.random.uniform(k1, (dim, dim, k, k), jnp.float32, -bound, bound)
    w2 = jax.random.uniform(k2, (dim, dim, k, k), jnp.float32, -bound, bound)
    b1 = jax.random.uniform(k3, (dim,), jnp.float32, -bound, bound)
    b2 = jax.random.uniform(k4, (dim,), jnp.float32, -bound, bound)
    w1 = _spectral_normalize(w1)
    w2 = _spectral_normalize(w2)
    return {
        # kernel layout: (kh, kw, C_in, C_out)
        "w1": jnp.transpose(w1, (2, 3, 1, 0)), "b1": b1.reshape(1, dim),
        "w2": jnp.transpose(w2, (2, 3, 1, 0)), "b2": b2.reshape(1, dim),
        # PyTorch OIHW copies, only for the pure-JAX reference check
        "w1_oihw": w1, "w2_oihw": w2,
    }


def reference_forward(x_nchw, params):
    def conv(x, w_oihw, b):
        xp = jnp.pad(x, ((0, 0), (0, 0), (1, 1), (1, 1)), mode="reflect")
        y = lax.conv_general_dilated(xp, w_oihw, (1, 1), "VALID",
                                     dimension_numbers=("NCHW", "OIHW", "NCHW"))
        return y + b.reshape(1, -1, 1, 1)

    y = jax.nn.relu(conv(x_nchw, params["w1_oihw"], params["b1"].reshape(-1)))
    y = conv(y, params["w2_oihw"], params["b2"].reshape(-1))
    return x_nchw + y


if __name__ == "__main__":
    key = jax.random.PRNGKey(0)
    kx, kp = jax.random.split(key)
    N, C, H, W = 2, 4, 16, 16                       # dim = 4 (toy shapes)
    x_nchw = jax.random.normal(kx, (N, C, H, W), jnp.float32)
    params = init_params(kp, C)

    ref_nhwc = jnp.transpose(reference_forward(x_nchw, params), (0, 2, 3, 1))
    x_nhwc = jnp.transpose(x_nchw, (0, 2, 3, 1))    # layout conversion once,
                                                    # outside the kernel path

    # fp32 matmul path: tight tolerance; sweep row tiles to cover first /
    # interior / last tile handling, the 2-tile case, and R=1 (single tile).
    for th in (4, 8, 16):
        out = jax.block_until_ready(
            resnet_block_forward(x_nhwc, params, row_tile=th,
                                 compute_dtype=jnp.float32))
        assert out.shape == (N, H, W, C)
        err = float(jnp.max(jnp.abs(out - ref_nhwc)))
        assert err < 1e-4, (th, err)

    # bf16 matmul path (production perf config): looser tolerance.  Note the
    # intermediate y is quantized to bf16 before conv2 (intentional).
    out_bf = jax.block_until_ready(
        resnet_block_forward(x_nhwc, params, row_tile=8,
                             compute_dtype=jnp.bfloat16))
    err_bf = float(jnp.max(jnp.abs(out_bf - ref_nhwc)))
    assert err_bf < 5e-2, err_bf

    print("KERNEL_OK")
</pallas_src>

<mosaic_0001>
module attributes {stable_mosaic.version = 11 : i64} {
  func.func @kernel(%arg0: i32, %arg1: i32, %arg2: memref<1x2x16x4xf32, #tpu.memory_space<vmem>>, %arg3: memref<1x4x16x4xf32, #tpu.memory_space<vmem>>, %arg4: memref<1x2x16x4xf32, #tpu.memory_space<vmem>>, %arg5: memref<3x12x4xf32, #tpu.memory_space<vmem>>, %arg6: memref<1x4xf32, #tpu.memory_space<vmem>>, %arg7: memref<3x12x4xf32, #tpu.memory_space<vmem>>, %arg8: memref<1x4xf32, #tpu.memory_space<vmem>>, %arg9: memref<1x4x16x4xf32, #tpu.memory_space<vmem>>) attributes {dimension_semantics = [#tpu.dimension_semantics<parallel>, #tpu.dimension_semantics<parallel>], iteration_bounds = array<i64: 2, 4>, scalar_prefetch = 0 : i64, scratch_operands = 0 : i64, tpu.core_type = #tpu.core_type<tc>, window_params = [{transform_indices = @transform_0, window_bounds = array<i64: 1, 2, 16, 4>}, {transform_indices = @transform_1, window_bounds = array<i64: 1, 4, 16, 4>}, {transform_indices = @transform_2, window_bounds = array<i64: 1, 2, 16, 4>}, {pipeline_mode = #tpu.pipeline_mode<synchronous>, transform_indices = @transform_3, window_bounds = array<i64: 3, 12, 4>}, {pipeline_mode = #tpu.pipeline_mode<synchronous>, transform_indices = @transform_4, window_bounds = array<i64: 1, 4>}, {pipeline_mode = #tpu.pipeline_mode<synchronous>, transform_indices = @transform_5, window_bounds = array<i64: 3, 12, 4>}, {pipeline_mode = #tpu.pipeline_mode<synchronous>, transform_indices = @transform_6, window_bounds = array<i64: 1, 4>}, {transform_indices = @transform_7, window_bounds = array<i64: 1, 4, 16, 4>}]} {
    %c0 = arith.constant 0 : index
    %c0_0 = arith.constant 0 : index
    %c0_1 = arith.constant 0 : index
    %c0_2 = arith.constant 0 : index
    %0 = vector.load %arg2[%c0, %c0_0, %c0_1, %c0_2] : memref<1x2x16x4xf32, #tpu.memory_space<vmem>>, vector<1x2x16x4xf32>
    %1 = vector.shape_cast %0 : vector<1x2x16x4xf32> to vector<2x16x4xf32>
    %c0_3 = arith.constant 0 : index
    %c0_4 = arith.constant 0 : index
    %c0_5 = arith.constant 0 : index
    %c0_6 = arith.constant 0 : index
    %2 = vector.load %arg3[%c0_3, %c0_4, %c0_5, %c0_6] : memref<1x4x16x4xf32, #tpu.memory_space<vmem>>, vector<1x4x16x4xf32>
    %3 = vector.shape_cast %2 : vector<1x4x16x4xf32> to vector<4x16x4xf32>
    %c0_7 = arith.constant 0 : index
    %c0_8 = arith.constant 0 : index
    %c0_9 = arith.constant 0 : index
    %c0_10 = arith.constant 0 : index
    %4 = vector.load %arg4[%c0_7, %c0_8, %c0_9, %c0_10] : memref<1x2x16x4xf32, #tpu.memory_space<vmem>>, vector<1x2x16x4xf32>
    %5 = vector.shape_cast %4 : vector<1x2x16x4xf32> to vector<2x16x4xf32>
    %6 = tpu.concatenate %1, %3, %5 in 0 : vector<2x16x4xf32>, vector<4x16x4xf32>, vector<2x16x4xf32> -> vector<8x16x4xf32>
    %c0_11 = arith.constant 0 : index
    %c0_12 = arith.constant 0 : index
    %7 = vector.load %arg6[%c0_11, %c0_12] : memref<1x4xf32, #tpu.memory_space<vmem>>, vector<1x4xf32>
    %c0_13 = arith.constant 0 : index
    %c0_14 = arith.constant 0 : index
    %8 = vector.load %arg8[%c0_13, %c0_14] : memref<1x4xf32, #tpu.memory_space<vmem>>, vector<1x4xf32>
    %9 = vector.extract_strided_slice %6 {offsets = [0, 1, 0], sizes = [8, 1, 4], strides = [1, 1, 1]} : vector<8x16x4xf32> to vector<8x1x4xf32>
    %10 = vector.extract_strided_slice %6 {offsets = [0, 0, 0], sizes = [8, 15, 4], strides = [1, 1, 1]} : vector<8x16x4xf32> to vector<8x15x4xf32>
    %11 = tpu.concatenate %9, %10 in 1 : vector<8x1x4xf32>, vector<8x15x4xf32> -> vector<8x16x4xf32>
    %12 = vector.extract_strided_slice %6 {offsets = [0, 1, 0], sizes = [8, 15, 4], strides = [1, 1, 1]} : vector<8x16x4xf32> to vector<8x15x4xf32>
    %13 = vector.extract_strided_slice %6 {offsets = [0, 14, 0], sizes = [8, 1, 4], strides = [1, 1, 1]} : vector<8x16x4xf32> to vector<8x1x4xf32>
    %14 = tpu.concatenate %12, %13 in 1 : vector<8x15x4xf32>, vector<8x1x4xf32> -> vector<8x16x4xf32>
    %15 = tpu.concatenate %11, %6, %14 in 2 : vector<8x16x4xf32>, vector<8x16x4xf32>, vector<8x16x4xf32> -> vector<8x16x12xf32>
    %16 = vector.extract_strided_slice %15 {offsets = [0, 0, 0], sizes = [6, 16, 12], strides = [1, 1, 1]} : vector<8x16x12xf32> to vector<6x16x12xf32>
    %17 = vector.shape_cast %16 : vector<6x16x12xf32> to vector<96x12xf32>
    %c0_15 = arith.constant 0 : index
    %c0_16 = arith.constant 0 : index
    %c0_17 = arith.constant 0 : index
    %18 = vector.load %arg5[%c0_15, %c0_16, %c0_17] : memref<3x12x4xf32, #tpu.memory_space<vmem>>, vector<1x12x4xf32>
    %19 = vector.shape_cast %18 : vector<1x12x4xf32> to vector<12x4xf32>
    %cst = arith.constant dense<0.000000e+00> : vector<96x4xf32>
    %20 = tpu.matmul %17, %19, %cst {dimension_numbers = #tpu.dot_dimension_numbers<[1], [0], [0], [1], [0, 0, 1, 1], [], []>} : vector<96x12xf32>, vector<12x4xf32>, vector<96x4xf32> -> vector<96x4xf32>
    %21 = vector.extract_strided_slice %15 {offsets = [1, 0, 0], sizes = [6, 16, 12], strides = [1, 1, 1]} : vector<8x16x12xf32> to vector<6x16x12xf32>
    %22 = vector.shape_cast %21 : vector<6x16x12xf32> to vector<96x12xf32>
    %c1 = arith.constant 1 : index
    %c0_18 = arith.constant 0 : index
    %c0_19 = arith.constant 0 : index
    %23 = vector.load %arg5[%c1, %c0_18, %c0_19] : memref<3x12x4xf32, #tpu.memory_space<vmem>>, vector<1x12x4xf32>
    %24 = vector.shape_cast %23 : vector<1x12x4xf32> to vector<12x4xf32>
    %cst_20 = arith.constant dense<0.000000e+00> : vector<96x4xf32>
    %25 = tpu.matmul %22, %24, %cst_20 {dimension_numbers = #tpu.dot_dimension_numbers<[1], [0], [0], [1], [0, 0, 1, 1], [], []>} : vector<96x12xf32>, vector<12x4xf32>, vector<96x4xf32> -> vector<96x4xf32>
    %26 = arith.addf %20, %25 : vector<96x4xf32>
    %27 = vector.extract_strided_slice %15 {offsets = [2, 0, 0], sizes = [6, 16, 12], strides = [1, 1, 1]} : vector<8x16x12xf32> to vector<6x16x12xf32>
    %28 = vector.shape_cast %27 : vector<6x16x12xf32> to vector<96x12xf32>
    %c2 = arith.constant 2 : index
    %c0_21 = arith.constant 0 : index
    %c0_22 = arith.constant 0 : index
    %29 = vector.load %arg5[%c2, %c0_21, %c0_22] : memref<3x12x4xf32, #tpu.memory_space<vmem>>, vector<1x12x4xf32>
    %30 = vector.shape_cast %29 : vector<1x12x4xf32> to vector<12x4xf32>
    %cst_23 = arith.constant dense<0.000000e+00> : vector<96x4xf32>
    %31 = tpu.matmul %28, %30, %cst_23 {dimension_numbers = #tpu.dot_dimension_numbers<[1], [0], [0], [1], [0, 0, 1, 1], [], []>} : vector<96x12xf32>, vector<12x4xf32>, vector<96x4xf32> -> vector<96x4xf32>
    %32 = arith.addf %26, %31 : vector<96x4xf32>
    %33 = vector.broadcast %7 : vector<1x4xf32> to vector<96x4xf32>
    %34 = arith.addf %32, %33 : vector<96x4xf32>
    %cst_24 = arith.constant 0.000000e+00 : f32
    %35 = vector.broadcast %cst_24 : f32 to vector<96x4xf32>
    %36 = arith.maximumf %34, %35 : vector<96x4xf32>
    %37 = vector.shape_cast %36 : vector<96x4xf32> to vector<6x16x4xf32>
    %c0_i32 = arith.constant 0 : i32
    %38 = arith.cmpi eq, %arg1, %c0_i32 : i32
    %39 = vector.extract_strided_slice %37 {offsets = [2, 0, 0], sizes = [1, 16, 4], strides = [1, 1, 1]} : vector<6x16x4xf32> to vector<1x16x4xf32>
    %40 = vector.shape_cast %39 : vector<1x16x4xf32> to vector<16x4xf32>
    %41 = vector.extract_strided_slice %37 {offsets = [0, 0, 0], sizes = [1, 16, 4], strides = [1, 1, 1]} : vector<6x16x4xf32> to vector<1x16x4xf32>
    %42 = vector.shape_cast %41 : vector<1x16x4xf32> to vector<16x4xf32>
    %43 = arith.select %38, %40, %42 : vector<16x4xf32>
    %c3_i32 = arith.constant 3 : i32
    %44 = arith.cmpi eq, %arg1, %c3_i32 : i32
    %45 = vector.extract_strided_slice %37 {offsets = [3, 0, 0], sizes = [1, 16, 4], strides = [1, 1, 1]} : vector<6x16x4xf32> to vector<1x16x4xf32>
    %46 = vector.shape_cast %45 : vector<1x16x4xf32> to vector<16x4xf32>
    %47 = vector.extract_strided_slice %37 {offsets = [5, 0, 0], sizes = [1, 16, 4], strides = [1, 1, 1]} : vector<6x16x4xf32> to vector<1x16x4xf32>
    %48 = vector.shape_cast %47 : vector<1x16x4xf32> to vector<16x4xf32>
    %49 = arith.select %44, %46, %48 : vector<16x4xf32>
    %50 = vector.shape_cast %43 : vector<16x4xf32> to vector<1x16x4xf32>
    %51 = vector.extract_strided_slice %37 {offsets = [1, 0, 0], sizes = [4, 16, 4], strides = [1, 1, 1]} : vector<6x16x4xf32> to vector<4x16x4xf32>
    %52 = vector.shape_cast %49 : vector<16x4xf32> to vector<1x16x4xf32>
    %53 = tpu.concatenate %50, %51, %52 in 0 : vector<1x16x4xf32>, vector<4x16x4xf32>, vector<1x16x4xf32> -> vector<6x16x4xf32>
    %54 = vector.extract_strided_slice %53 {offsets = [0, 1, 0], sizes = [6, 1, 4], strides = [1, 1, 1]} : vector<6x16x4xf32> to vector<6x1x4xf32>
    %55 = vector.extract_strided_slice %53 {offsets = [0, 0, 0], sizes = [6, 15, 4], strides = [1, 1, 1]} : vector<6x16x4xf32> to vector<6x15x4xf32>
    %56 = tpu.concatenate %54, %55 in 1 : vector<6x1x4xf32>, vector<6x15x4xf32> -> vector<6x16x4xf32>
    %57 = vector.extract_strided_slice %53 {offsets = [0, 1, 0], sizes = [6, 15, 4], strides = [1, 1, 1]} : vector<6x16x4xf32> to vector<6x15x4xf32>
    %58 = vector.extract_strided_slice %53 {offsets = [0, 14, 0], sizes = [6, 1, 4], strides = [1, 1, 1]} : vector<6x16x4xf32> to vector<6x1x4xf32>
    %59 = tpu.concatenate %57, %58 in 1 : vector<6x15x4xf32>, vector<6x1x4xf32> -> vector<6x16x4xf32>
    %60 = tpu.concatenate %56, %53, %59 in 2 : vector<6x16x4xf32>, vector<6x16x4xf32>, vector<6x16x4xf32> -> vector<6x16x12xf32>
    %61 = vector.extract_strided_slice %60 {offsets = [0, 0, 0], sizes = [4, 16, 12], strides = [1, 1, 1]} : vector<6x16x12xf32> to vector<4x16x12xf32>
    %62 = vector.shape_cast %61 : vector<4x16x12xf32> to vector<64x12xf32>
    %c0_25 = arith.constant 0 : index
    %c0_26 = arith.constant 0 : index
    %c0_27 = arith.constant 0 : index
    %63 = vector.load %arg7[%c0_25, %c0_26, %c0_27] : memref<3x12x4xf32, #tpu.memory_space<vmem>>, vector<1x12x4xf32>
    %64 = vector.shape_cast %63 : vector<1x12x4xf32> to vector<12x4xf32>
    %cst_28 = arith.constant dense<0.000000e+00> : vector<64x4xf32>
    %65 = tpu.matmul %62, %64, %cst_28 {dimension_numbers = #tpu.dot_dimension_numbers<[1], [0], [0], [1], [0, 0, 1, 1], [], []>} : vector<64x12xf32>, vector<12x4xf32>, vector<64x4xf32> -> vector<64x4xf32>
    %66 = vector.extract_strided_slice %60 {offsets = [1, 0, 0], sizes = [4, 16, 12], strides = [1, 1, 1]} : vector<6x16x12xf32> to vector<4x16x12xf32>
    %67 = vector.shape_cast %66 : vector<4x16x12xf32> to vector<64x12xf32>
    %c1_29 = arith.constant 1 : index
    %c0_30 = arith.constant 0 : index
    %c0_31 = arith.constant 0 : index
    %68 = vector.load %arg7[%c1_29, %c0_30, %c0_31] : memref<3x12x4xf32, #tpu.memory_space<vmem>>, vector<1x12x4xf32>
    %69 = vector.shape_cast %68 : vector<1x12x4xf32> to vector<12x4xf32>
    %cst_32 = arith.constant dense<0.000000e+00> : vector<64x4xf32>
    %70 = tpu.matmul %67, %69, %cst_32 {dimension_numbers = #tpu.dot_dimension_numbers<[1], [0], [0], [1], [0, 0, 1, 1], [], []>} : vector<64x12xf32>, vector<12x4xf32>, vector<64x4xf32> -> vector<64x4xf32>
    %71 = arith.addf %65, %70 : vector<64x4xf32>
    %72 = vector.extract_strided_slice %60 {offsets = [2, 0, 0], sizes = [4, 16, 12], strides = [1, 1, 1]} : vector<6x16x12xf32> to vector<4x16x12xf32>
    %73 = vector.shape_cast %72 : vector<4x16x12xf32> to vector<64x12xf32>
    %c2_33 = arith.constant 2 : index
    %c0_34 = arith.constant 0 : index
    %c0_35 = arith.constant 0 : index
    %74 = vector.load %arg7[%c2_33, %c0_34, %c0_35] : memref<3x12x4xf32, #tpu.memory_space<vmem>>, vector<1x12x4xf32>
    %75 = vector.shape_cast %74 : vector<1x12x4xf32> to vector<12x4xf32>
    %cst_36 = arith.constant dense<0.000000e+00> : vector<64x4xf32>
    %76 = tpu.matmul %73, %75, %cst_36 {dimension_numbers = #tpu.dot_dimension_numbers<[1], [0], [0], [1], [0, 0, 1, 1], [], []>} : vector<64x12xf32>, vector<12x4xf32>, vector<64x4xf32> -> vector<64x4xf32>
    %77 = arith.addf %71, %76 : vector<64x4xf32>
    %78 = vector.broadcast %8 : vector<1x4xf32> to vector<64x4xf32>
    %79 = arith.addf %77, %78 : vector<64x4xf32>
    %80 = vector.shape_cast %79 : vector<64x4xf32> to vector<4x16x4xf32>
    %c0_37 = arith.constant 0 : index
    %c0_38 = arith.constant 0 : index
    %c0_39 = arith.constant 0 : index
    %c0_40 = arith.constant 0 : index
    %81 = vector.load %arg3[%c0_37, %c0_38, %c0_39, %c0_40] : memref<1x4x16x4xf32, #tpu.memory_space<vmem>>, vector<1x4x16x4xf32>
    %82 = vector.shape_cast %81 : vector<1x4x16x4xf32> to vector<4x16x4xf32>
    %83 = arith.addf %80, %82 : vector<4x16x4xf32>
    %c0_41 = arith.constant 0 : index
    %c0_42 = arith.constant 0 : index
    %c0_43 = arith.constant 0 : index
    %c0_44 = arith.constant 0 : index
    %84 = vector.load %arg9[%c0_41, %c0_42, %c0_43, %c0_44] : memref<1x4x16x4xf32, #tpu.memory_space<vmem>>, vector<1x4x16x4xf32>
    %85 = vector.shape_cast %84 : vector<1x4x16x4xf32> to vector<4x16x4xf32>
    %86 = vector.shape_cast %83 : vector<4x16x4xf32> to vector<1x4x16x4xf32>
    tpu.vector_store %arg9[%c0_41, %c0_42, %c0_43, %c0_44], %86 {strides = array<i32>} : memref<1x4x16x4xf32, #tpu.memory_space<vmem>>, vector<1x4x16x4xf32>,
    return
  }
  func.func @transform_0(%arg0: i32, %arg1: i32) -> (i32, i32, i32, i32) {
    %c2_i32 = arith.constant 2 : i32
    %0 = arith.muli %arg1, %c2_i32 : i32
    %c1_i32 = arith.constant 1 : i32
    %1 = arith.subi %0, %c1_i32 : i32
    %c0_i32 = arith.constant 0 : i32
    %2 = arith.maxsi %1, %c0_i32 : i32
    %c0_i32_0 = arith.constant 0 : i32
    %c0_i32_1 = arith.constant 0 : i32
    %c0_i32_2 = arith.constant 0 : i32
    return %arg0, %2, %c0_i32_0, %c0_i32_1 : i32, i32, i32, i32
  }
  func.func @transform_1(%arg0: i32, %arg1: i32) -> (i32, i32, i32, i32) {
    %c0_i32 = arith.constant 0 : i32
    %c0_i32_0 = arith.constant 0 : i32
    %c0_i32_1 = arith.constant 0 : i32
    return %arg0, %arg1, %c0_i32, %c0_i32_0 : i32, i32, i32, i32
  }
  func.func @transform_2(%arg0: i32, %arg1: i32) -> (i32, i32, i32, i32) {
    %c1_i32 = arith.constant 1 : i32
    %0 = arith.addi %arg1, %c1_i32 : i32
    %c2_i32 = arith.constant 2 : i32
    %1 = arith.muli %0, %c2_i32 : i32
    %c7_i32 = arith.constant 7 : i32
    %2 = arith.minsi %1, %c7_i32 : i32
    %c0_i32 = arith.constant 0 : i32
    %c0_i32_0 = arith.constant 0 : i32
    %c0_i32_1 = arith.constant 0 : i32
    return %arg0, %2, %c0_i32, %c0_i32_0 : i32, i32, i32, i32
  }
  func.func @transform_3(%arg0: i32, %arg1: i32) -> (i32, i32, i32) {
    %c0_i32 = arith.constant 0 : i32
    %c0_i32_0 = arith.constant 0 : i32
    %c0_i32_1 = arith.constant 0 : i32
    %c0_i32_2 = arith.constant 0 : i32
    return %c0_i32, %c0_i32_0, %c0_i32_1 : i32, i32, i32
  }
  func.func @transform_4(%arg0: i32, %arg1: i32) -> (i32, i32) {
    %c0_i32 = arith.constant 0 : i32
    %c0_i32_0 = arith.constant 0 : i32
    %c0_i32_1 = arith.constant 0 : i32
    return %c0_i32, %c0_i32_0 : i32, i32
  }
  func.func @transform_5(%arg0: i32, %arg1: i32) -> (i32, i32, i32) {
    %c0_i32 = arith.constant 0 : i32
    %c0_i32_0 = arith.constant 0 : i32
    %c0_i32_1 = arith.constant 0 : i32
    %c0_i32_2 = arith.constant 0 : i32
    return %c0_i32, %c0_i32_0, %c0_i32_1 : i32, i32, i32
  }
  func.func @transform_6(%arg0: i32, %arg1: i32) -> (i32, i32) {
    %c0_i32 = arith.constant 0 : i32
    %c0_i32_0 = arith.constant 0 : i32
    %c0_i32_1 = arith.constant 0 : i32
    return %c0_i32, %c0_i32_0 : i32, i32
  }
  func.func @transform_7(%arg0: i32, %arg1: i32) -> (i32, i32, i32, i32) {
    %c0_i32 = arith.constant 0 : i32
    %c0_i32_0 = arith.constant 0 : i32
    %c0_i32_1 = arith.constant 0 : i32
    return %arg0, %arg1, %c0_i32, %c0_i32_0 : i32, i32, i32, i32
  }
}

</mosaic_0001>

<llo_original>
// kernel: tpu_custom_call.1
$region0: #{tpu_custom_call.1}
  #allocation0 [shape = 'u32[]', space=smem, size = 0x4, offset = 0x4, fixed_abs, tag = 'smem constant byte address 0x4 - core index']
  #allocation1 [shape = 'u32[144,128]{1,0:T(1,128)}', space=vmem, size = 0x12000, scoped, tag = 'internal scratch']
  %s0 = inlined_call_operand.hbm [shape: f32[2,16,16,4], index: 0, kind: input, shape index: {}]
  %s1 = inlined_call_operand.hbm [shape: f32[2,16,16,4], index: 1, kind: input, shape index: {}]
  %s2 = inlined_call_operand.hbm [shape: f32[2,16,16,4], index: 2, kind: input, shape index: {}]
  %s3 = inlined_call_operand.hbm [shape: f32[3,12,4], index: 3, kind: input, shape index: {}]
  %s4 = inlined_call_operand.hbm [shape: f32[1,4], index: 4, kind: input, shape index: {}]
  %s5 = inlined_call_operand.hbm [shape: f32[3,12,4], index: 5, kind: input, shape index: {}]
  %s6 = inlined_call_operand.hbm [shape: f32[1,4], index: 6, kind: input, shape index: {}]
  %s7 = inlined_call_operand.hbm [shape: f32[2,16,16,4], index: 7, kind: output, shape index: {}]
  %s8 = sld [smem:[#allocation0]]
  $region89: #{tpu_custom_call.1} parent=0
    _
  %s10 = ssub.s32 1, %s8
  %s11 = scalar_select 0, %s10, %s8
  $region1: #{tpu_custom_call.1} parent=0
    #allocation2 [shape = 'u8[32768]{0}', space=vmem, size = 0x8000, scoped, tag = 'input window, operand 0']
    #allocation3 [shape = 's32[2]{0}', space=sflag, size = 0x8, scoped, tag = 'scoped memory for tpu_custom_call.1']
    #allocation4 [shape = 's32[2]{0}', space=sflag, size = 0x8, scoped, tag = 'scoped memory for tpu_custom_call.1']
    #allocation5 [shape = 'u8[65536]{0}', space=vmem, size = 0x10000, scoped, tag = 'input window, operand 1']
    #allocation6 [shape = 's32[2]{0}', space=sflag, size = 0x8, scoped, tag = 'scoped memory for tpu_custom_call.1']
    #allocation7 [shape = 'u8[32768]{0}', space=vmem, size = 0x8000, scoped, tag = 'input window, operand 2']
    #allocation8 [shape = 'u8[24576]{0}', space=vmem, size = 0x6000, scoped, tag = 'input window, operand 3, single buffered']
    #allocation9 [shape = 's32[1]{0}', space=sflag, size = 0x4, scoped, tag = 'scoped memory for tpu_custom_call.1']
    #allocation10 [shape = 'u8[512]{0}', space=vmem, size = 0x400, scoped, tag = 'input window, operand 4, single buffered']
    #allocation11 [shape = 'u8[24576]{0}', space=vmem, size = 0x6000, scoped, tag = 'input window, operand 5, single buffered']
    #allocation12 [shape = 's32[1]{0}', space=sflag, size = 0x4, scoped, tag = 'scoped memory for tpu_custom_call.1']
    #allocation13 [shape = 'u8[512]{0}', space=vmem, size = 0x400, scoped, tag = 'input window, operand 6, single buffered']
    #allocation14 [shape = 'u8[65536]{0}', space=vmem, size = 0x10000, scoped, tag = 'output window, operand 0']
    %12 = vsyncpa [#allocation3], 0
    %s13 = scalar_lea.sflag [#allocation3], 1
    %14 = vsyncpa %s13, 0
    %15 = vsyncpa [#allocation6], 0
    %s16 = scalar_lea.sflag [#allocation6], 1
    %17 = vsyncpa %s16, 0
    %18 = vsyncpa [#allocation9], 0
    %19 = vsyncpa [#allocation12], 0
    %20 = vsyncpa [#allocation4], 0
    %s21 = scalar_lea.sflag [#allocation4], 1
    %22 = vsyncpa %s21, 0
    loop: start=0, step=1, limit=10
    $region2: #{tpu_custom_call.1} parent=1 // loop_pre_header
      _
    $region3: #{tpu_custom_call.1} parent=1 // loop_header
      %s24 = sphi 0, %s28
      %p25 = scmp.ge.s32.totalorder %s24, 10
      %s31 = sphi 0, %s43
      %s32 = sphi 0, %s39
      %s33 = sphi 0, %s31
      %s34 = sphi 0, %s32
      %s35 = sphi 0, %s33
      %s36 = sphi 0, %s34
      %s56 = sphi 0, %s58
      %s59 = sphi 0, %s56
      %s60 = sphi 0, %s59
      %s76 = sphi 0, %s60
      %s84 = sphi 0, %s86
      %s87 = sphi 0, %s84
      %s88 = sphi 0, %s87
      %s104 = sphi 0, %s88
      %s120 = sphi 0, %s122
      %s123 = sphi 0, %s120
      %s124 = sphi 0, %s123
      %s140 = sphi 0, %s124
      %s144 = sphi 0, %s144
      %s146 = sphi 0, %s144
      %s147 = sphi 0, %s146
      %s161 = sphi 0, %s147
      %s165 = sphi 0, %s165
      %s167 = sphi 0, %s165
      %s168 = sphi 0, %s167
      %s182 = sphi 0, %s168
      %s186 = sphi 0, %s186
      %s188 = sphi 0, %s186
      %s189 = sphi 0, %s188
      %s203 = sphi 0, %s189
      %s207 = sphi 0, %s207
      %s209 = sphi 0, %s207
      %s210 = sphi 0, %s209
      %s224 = sphi 0, %s210
      %s232 = sphi 0, %s234
      %s235 = sphi 0, %s232
      %s236 = sphi 0, %s235
      %s252 = sphi 0, %s236
    $region4: #{tpu_custom_call.1} parent=1 // loop_header_branch
      %27 = sbr.rel (%p25) target = $region8
    $region5: #{tpu_custom_call.1} parent=1 // loop_body
      %s29 = ssub.s32 %s24, 1
      %s30 = ssub.s32 %s24, 2
      %s37 = sadd.s32 1, %s32
      %p38 = scmp.ge.s32.totalorder %s37, 4
      %s39 = scalar_select %p38, 0, %s37
      %s40 = sadd.s32 1, %s31
      %s41 = scalar_select %p38, %s40, %s31
      %p42 = scmp.ge.s32.totalorder %s41, 2
      %s43 = scalar_select %p42, 0, %s41
      %s44 = smul.u32 %s32, 2
      %s45 = ssub.s32 %s44, 1
      %p46 = scmp.gt.s32.totalorder %s45, 0
      %s47 = scalar_select %p46, %s45, 0
      %s48 = smul.u32 %s39, 2
      %s49 = ssub.s32 %s48, 1
      %p50 = scmp.gt.s32.totalorder %s49, 0
      %s51 = scalar_select %p50, %s49, 0
      %s52 = ssub.s32 %s31, %s43
      %s53 = ssub.s32 %s47, %s51
      %s54 = sor.u32 %s52, %s53
      %p55 = scmp.eq.s32.totalorder %s54, 0
      %s57 = sadd.s32 %s56, 1
      %s58 = scalar_select %p55, %s56, %s57
      %p61 = pneg %p55
      %p62 = scmp.eq.s32.totalorder %s24, 7
      %p63 = por %p61, %p62
      %p64 = scmp.ne.s32.totalorder %s56, %s59
      %p65 = scmp.eq.s32.totalorder %s24, 0
      %p66 = por %p64, %p65
      %p67 = scmp.ne.s32.totalorder %s56, %s59
      %p68 = scmp.eq.s32.totalorder %s29, 7
      %p69 = por %p67, %p68
      %p70 = scmp.ne.s32.totalorder %s59, %s60
      %p71 = scmp.eq.s32.totalorder %s29, 0
      %p72 = por %p70, %p71
      %p73 = scmp.ne.s32.totalorder %s59, %s60
      %p74 = scmp.eq.s32.totalorder %s30, 7
      %p75 = por %p73, %p74
      %p77 = scmp.ne.s32.totalorder %s60, %s76
      %p78 = scmp.eq.s32.totalorder %s30, 0
      %p79 = por %p77, %p78
      %s80 = ssub.s32 %s31, %s43
      %s81 = ssub.s32 %s32, %s39
      %s82 = sor.u32 %s80, %s81
      %p83 = scmp.eq.s32.totalorder %s82, 0
      %s85 = sadd.s32 %s84, 1
      %s86 = scalar_select %p83, %s84, %s85
      %p89 = pneg %p83
      %p90 = scmp.eq.s32.totalorder %s24, 7
      %p91 = por %p89, %p90
      %p92 = scmp.ne.s32.totalorder %s84, %s87
      %p93 = scmp.eq.s32.totalorder %s24, 0
      %p94 = por %p92, %p93
      %p95 = scmp.ne.s32.totalorder %s84, %s87
      %p96 = scmp.eq.s32.totalorder %s29, 7
      %p97 = por %p95, %p96
      %p98 = scmp.ne.s32.totalorder %s87, %s88
      %p99 = scmp.eq.s32.totalorder %s29, 0
      %p100 = por %p98, %p99
      %p101 = scmp.ne.s32.totalorder %s87, %s88
      %p102 = scmp.eq.s32.totalorder %s30, 7
      %p103 = por %p101, %p102
      %p105 = scmp.ne.s32.totalorder %s88, %s104
      %p106 = scmp.eq.s32.totalorder %s30, 0
      %p107 = por %p105, %p106
      %s108 = sadd.s32 %s32, 1
      %s109 = smul.u32 %s108, 2
      %p110 = scmp.lt.s32.totalorder %s109, 7
      %s111 = scalar_select %p110, %s109, 7
      %s112 = sadd.s32 %s39, 1
      %s113 = smul.u32 %s112, 2
      %p114 = scmp.lt.s32.totalorder %s113, 7
      %s115 = scalar_select %p114, %s113, 7
      %s116 = ssub.s32 %s31, %s43
      %s117 = ssub.s32 %s111, %s115
      %s118 = sor.u32 %s116, %s117
      %p119 = scmp.eq.s32.totalorder %s118, 0
      %s121 = sadd.s32 %s120, 1
      %s122 = scalar_select %p119, %s120, %s121
      %p125 = pneg %p119
      %p126 = scmp.eq.s32.totalorder %s24, 7
      %p127 = por %p125, %p126
      %p128 = scmp.ne.s32.totalorder %s120, %s123
      %p129 = scmp.eq.s32.totalorder %s24, 0
      %p130 = por %p128, %p129
      %p131 = scmp.ne.s32.totalorder %s120, %s123
      %p132 = scmp.eq.s32.totalorder %s29, 7
      %p133 = por %p131, %p132
      %p134 = scmp.ne.s32.totalorder %s123, %s124
      %p135 = scmp.eq.s32.totalorder %s29, 0
      %p136 = por %p134, %p135
      %p137 = scmp.ne.s32.totalorder %s123, %s124
      %p138 = scmp.eq.s32.totalorder %s30, 7
      %p139 = por %p137, %p138
      %p141 = scmp.ne.s32.totalorder %s124, %s140
      %p142 = scmp.eq.s32.totalorder %s30, 0
      %p143 = por %p141, %p142
      %s145 = sadd.s32 %s144, 1
      %p148 = scmp.eq.s32.totalorder %s24, 7
      %p149 = scmp.ne.s32.totalorder %s144, %s146
      %p150 = scmp.eq.s32.totalorder %s24, 0
      %p151 = por %p149, %p150
      %p152 = scmp.ne.s32.totalorder %s144, %s146
      %p153 = scmp.eq.s32.totalorder %s29, 7
      %p154 = por %p152, %p153
      %p155 = scmp.ne.s32.totalorder %s146, %s147
      %p156 = scmp.eq.s32.totalorder %s29, 0
      %p157 = por %p155, %p156
      %p158 = scmp.ne.s32.totalorder %s146, %s147
      %p159 = scmp.eq.s32.totalorder %s30, 7
      %p160 = por %p158, %p159
      %p162 = scmp.ne.s32.totalorder %s147, %s161
      %p163 = scmp.eq.s32.totalorder %s30, 0
      %p164 = por %p162, %p163
      %s166 = sadd.s32 %s165, 1
      %p169 = scmp.eq.s32.totalorder %s24, 7
      %p170 = scmp.ne.s32.totalorder %s165, %s167
      %p171 = scmp.eq.s32.totalorder %s24, 0
      %p172 = por %p170, %p171
      %p173 = scmp.ne.s32.totalorder %s165, %s167
      %p174 = scmp.eq.s32.totalorder %s29, 7
      %p175 = por %p173, %p174
      %p176 = scmp.ne.s32.totalorder %s167, %s168
      %p177 = scmp.eq.s32.totalorder %s29, 0
      %p178 = por %p176, %p177
      %p179 = scmp.ne.s32.totalorder %s167, %s168
      %p180 = scmp.eq.s32.totalorder %s30, 7
      %p181 = por %p179, %p180
      %p183 = scmp.ne.s32.totalorder %s168, %s182
      %p184 = scmp.eq.s32.totalorder %s30, 0
      %p185 = por %p183, %p184
      %s187 = sadd.s32 %s186, 1
      %p190 = scmp.eq.s32.totalorder %s24, 7
      %p191 = scmp.ne.s32.totalorder %s186, %s188
      %p192 = scmp.eq.s32.totalorder %s24, 0
      %p193 = por %p191, %p192
      %p194 = scmp.ne.s32.totalorder %s186, %s188
      %p195 = scmp.eq.s32.totalorder %s29, 7
      %p196 = por %p194, %p195
      %p197 = scmp.ne.s32.totalorder %s188, %s189
      %p198 = scmp.eq.s32.totalorder %s29, 0
      %p199 = por %p197, %p198
      %p200 = scmp.ne.s32.totalorder %s188, %s189
      %p201 = scmp.eq.s32.totalorder %s30, 7
      %p202 = por %p200, %p201
      %p204 = scmp.ne.s32.totalorder %s189, %s203
      %p205 = scmp.eq.s32.totalorder %s30, 0
      %p206 = por %p204, %p205
      %s208 = sadd.s32 %s207, 1
      %p211 = scmp.eq.s32.totalorder %s24, 7
      %p212 = scmp.ne.s32.totalorder %s207, %s209
      %p213 = scmp.eq.s32.totalorder %s24, 0
      %p214 = por %p212, %p213
      %p215 = scmp.ne.s32.totalorder %s207, %s209
      %p216 = scmp.eq.s32.totalorder %s29, 7
      %p217 = por %p215, %p216
      %p218 = scmp.ne.s32.totalorder %s209, %s210
      %p219 = scmp.eq.s32.totalorder %s29, 0
      %p220 = por %p218, %p219
      %p221 = scmp.ne.s32.totalorder %s209, %s210
      %p222 = scmp.eq.s32.totalorder %s30, 7
      %p223 = por %p221, %p222
      %p225 = scmp.ne.s32.totalorder %s210, %s224
      %p226 = scmp.eq.s32.totalorder %s30, 0
      %p227 = por %p225, %p226
      %s228 = ssub.s32 %s31, %s43
      %s229 = ssub.s32 %s32, %s39
      %s230 = sor.u32 %s228, %s229
      %p231 = scmp.eq.s32.totalorder %s230, 0
      %s233 = sadd.s32 %s232, 1
      %s234 = scalar_select %p231, %s232, %s233
      %p237 = pneg %p231
      %p238 = scmp.eq.s32.totalorder %s24, 7
      %p239 = por %p237, %p238
      %p240 = scmp.ne.s32.totalorder %s232, %s235
      %p241 = scmp.eq.s32.totalorder %s24, 0
      %p242 = por %p240, %p241
      %p243 = scmp.ne.s32.totalorder %s232, %s235
      %p244 = scmp.eq.s32.totalorder %s29, 7
      %p245 = por %p243, %p244
      %p246 = scmp.ne.s32.totalorder %s235, %s236
      %p247 = scmp.eq.s32.totalorder %s29, 0
      %p248 = por %p246, %p247
      %p249 = scmp.ne.s32.totalorder %s235, %s236
      %p250 = scmp.eq.s32.totalorder %s30, 7
      %p251 = por %p249, %p250
      %p253 = scmp.ne.s32.totalorder %s236, %s252
      %p254 = scmp.eq.s32.totalorder %s30, 0
      %p255 = por %p253, %p254
      %p256 = scmp.le.s32.totalorder 1, %s24
      %p257 = scmp.lt.s32.totalorder %s24, 9
      %p258 = pnand %p256, %p257
      %p259 = pneg %p258
      // Predicated region
      $region9: #{tpu_custom_call.1} parent=5 // pred_check
        _
      $region10: #{tpu_custom_call.1} parent=5 // pred_check_branch
        %261 = sbr.rel (%p258) target = $region12
      $region11: #{tpu_custom_call.1} parent=5 // pred_region
        %s262 = ssub.s32 %s24, 1
        // Predicated region
        $region13: #{tpu_custom_call.1} parent=11 // pred_check
          %p263 = pneg %p157
        $region14: #{tpu_custom_call.1} parent=11 // pred_check_branch
          %265 = sbr.rel (%p263) target = $region16
        $region15: #{tpu_custom_call.1} parent=11 // pred_region
          %s267 = ssub.s32 768, 768
          %268 = vsyncadd [#allocation9], %s267
          %s269 = sshll.u32 [#allocation8], 4
          %s270 = int_to_ptr.vmem [resolvable:$true] %s269
          %275 = dma.hbm_to_vmem [thread:$0]  %s3, 768, %s270, [#allocation9], 128, 128, 8
        $region16: #{tpu_custom_call.1} parent=11 // pred_fallthru
          _
        // Predicated region
        $region17: #{tpu_custom_call.1} parent=11 // pred_check
          %p276 = pneg %p178
        $region18: #{tpu_custom_call.1} parent=11 // pred_check_branch
          %278 = sbr.rel (%p276) target = $region20
        $region19: #{tpu_custom_call.1} parent=11 // pred_region
          %s280 = ssub.s32 16, 16
          %281 = vsyncadd [#allocation9], %s280
          %s283 = sshll.u32 [#allocation10], 4
          %s284 = int_to_ptr.vmem [resolvable:$true] %s283
          %286 = dma.hbm_to_vmem [thread:$0]  %s4, 16, %s284, [#allocation9]
        $region20: #{tpu_custom_call.1} parent=11 // pred_fallthru
          _
        // Predicated region
        $region21: #{tpu_custom_call.1} parent=11 // pred_check
          %p287 = pneg %p199
        $region22: #{tpu_custom_call.1} parent=11 // pred_check_branch
          %289 = sbr.rel (%p287) target = $region24
        $region23: #{tpu_custom_call.1} parent=11 // pred_region
          %s291 = ssub.s32 768, 768
          %292 = vsyncadd [#allocation12], %s291
          %s293 = sshll.u32 [#allocation11], 4
          %s294 = int_to_ptr.vmem [resolvable:$true] %s293
          %299 = dma.hbm_to_vmem [thread:$0]  %s5, 768, %s294, [#allocation12], 128, 128, 8
        $region24: #{tpu_custom_call.1} parent=11 // pred_fallthru
          _
        // Predicated region
        $region25: #{tpu_custom_call.1} parent=11 // pred_check
          %p300 = pneg %p220
        $region26: #{tpu_custom_call.1} parent=11 // pred_check_branch
          %302 = sbr.rel (%p300) target = $region28
        $region27: #{tpu_custom_call.1} parent=11 // pred_region
          %s304 = ssub.s32 16, 16
          %305 = vsyncadd [#allocation12], %s304
          %s307 = sshll.u32 [#allocation13], 4
          %s308 = int_to_ptr.vmem [resolvable:$true] %s307
          %310 = dma.hbm_to_vmem [thread:$0]  %s6, 16, %s308, [#allocation12]
        $region28: #{tpu_custom_call.1} parent=11 // pred_fallthru
          _
      $region12: #{tpu_custom_call.1} parent=5 // pred_fallthru
        _
      %p311 = scmp.lt.s32.totalorder %s24, 8
      // Predicated region
      $region29: #{tpu_custom_call.1} parent=5 // pred_check
        %p312 = pneg %p311
      $region30: #{tpu_custom_call.1} parent=5 // pred_check_branch
        %314 = sbr.rel (%p312) target = $region32
      $region31: #{tpu_custom_call.1} parent=5 // pred_region
        // Predicated region
        $region33: #{tpu_custom_call.1} parent=31 // pred_check
          %p315 = pneg %p66
        $region34: #{tpu_custom_call.1} parent=31 // pred_check_branch
          %317 = sbr.rel (%p315) target = $region36
        $region35: #{tpu_custom_call.1} parent=31 // pred_region
          %s318 = sand.u32 %s56, 1
          %s319 = scalar_lea.sflag [#allocation3], %s318
          %s320 = sand.u32 %s56, 1
          %s321 = smul.addr %s320, 32
          %s322 = scalar_lea.vmem [#allocation2], %s321
          %s323 = smul.u32 %s32, 2
          %s324 = ssub.s32 %s323, 1
          %p325 = scmp.gt.s32.totalorder %s324, 0
          %s326 = scalar_select %p325, %s324, 0
          %s327 = smul.u32 2, %s326
          %s329 = ssub.s32 512, 512
          %330 = vsyncadd %s319, %s329
          %s331 = smul.addr %s327, 2
          %s332 = smul.addr %s31, 32
          %s333 = sadd.s32 %s331, %s332
          %s334 = smul.addr %s333, 128
          %s335 = scalar_lea.hbm %s0, %s334
          %s336 = sshll.u32 %s322, 4
          %s337 = int_to_ptr.vmem [resolvable:$true] %s336
          %342 = dma.hbm_to_vmem [thread:$0]  %s335, 512, %s337, %s319, 128, 128, 8
        $region36: #{tpu_custom_call.1} parent=31 // pred_fallthru
          _
        // Predicated region
        $region37: #{tpu_custom_call.1} parent=31 // pred_check
          %p343 = pneg %p94
        $region38: #{tpu_custom_call.1} parent=31 // pred_check_branch
          %345 = sbr.rel (%p343) target = $region40
        $region39: #{tpu_custom_call.1} parent=31 // pred_region
          %s346 = sand.u32 %s24, 1
          %s347 = scalar_lea.sflag [#allocation6], %s346
          %s348 = sand.u32 %s84, 1
          %s349 = smul.addr %s348, 64
          %s350 = scalar_lea.vmem [#allocation5], %s349
          %s351 = smul.u32 4, %s32
          %s353 = ssub.s32 1024, 1024
          %354 = vsyncadd %s347, %s353
          %s355 = smul.addr %s351, 2
          %s356 = smul.addr %s31, 32
          %s357 = sadd.s32 %s355, %s356
          %s358 = smul.addr %s357, 128
          %s359 = scalar_lea.hbm %s1, %s358
          %s360 = sshll.u32 %s350, 4
          %s361 = int_to_ptr.vmem [resolvable:$true] %s360
          %366 = dma.hbm_to_vmem [thread:$0]  %s359, 1024, %s361, %s347, 128, 128, 8
        $region40: #{tpu_custom_call.1} parent=31 // pred_fallthru
          _
        // Predicated region
        $region41: #{tpu_custom_call.1} parent=31 // pred_check
          %p367 = pneg %p130
        $region42: #{tpu_custom_call.1} parent=31 // pred_check_branch
          %369 = sbr.rel (%p367) target = $region44
        $region43: #{tpu_custom_call.1} parent=31 // pred_region
          %s370 = sand.u32 %s24, 1
          %s371 = scalar_lea.sflag [#allocation6], %s370
          %s372 = sand.u32 %s120, 1
          %s373 = smul.addr %s372, 32
          %s374 = scalar_lea.vmem [#allocation7], %s373
          %s375 = sadd.s32 %s32, 1
          %s376 = smul.u32 %s375, 2
          %p377 = scmp.lt.s32.totalorder %s376, 7
          %s378 = scalar_select %p377, %s376, 7
          %s379 = smul.u32 2, %s378
          %s381 = ssub.s32 512, 512
          %382 = vsyncadd %s371, %s381
          %s383 = smul.addr %s379, 2
          %s384 = smul.addr %s31, 32
          %s385 = sadd.s32 %s383, %s384
          %s386 = smul.addr %s385, 128
          %s387 = scalar_lea.hbm %s2, %s386
          %s388 = sshll.u32 %s374, 4
          %s389 = int_to_ptr.vmem [resolvable:$true] %s388
          %394 = dma.hbm_to_vmem [thread:$0]  %s387, 512, %s389, %s371, 128, 128, 8
        $region44: #{tpu_custom_call.1} parent=31 // pred_fallthru
          _
      $region32: #{tpu_custom_call.1} parent=5 // pred_fallthru
        _
      %p395 = scmp.le.s32.totalorder 1, %s24
      %p396 = scmp.lt.s32.totalorder %s24, 9
      %p397 = pnand %p395, %p396
      %p398 = pneg %p397
      // Predicated region
      $region45: #{tpu_custom_call.1} parent=5 // pred_check
        _
      $region46: #{tpu_custom_call.1} parent=5 // pred_check_branch
        %400 = sbr.rel (%p397) target = $region48
      $region47: #{tpu_custom_call.1} parent=5 // pred_region
        %s401 = ssub.s32 %s24, 1
        %s402 = sand.u32 %s59, 1
        %s403 = scalar_lea.sflag [#allocation3], %s402
        %s404 = sand.u32 %s59, 1
        %s405 = smul.addr %s404, 32
        %s406 = scalar_lea.vmem [#allocation2], %s405
        // Predicated region
        $region49: #{tpu_custom_call.1} parent=47 // pred_check
          %p407 = pneg %p72
        $region50: #{tpu_custom_call.1} parent=47 // pred_check_branch
          %409 = sbr.rel (%p407) target = $region52
        $region51: #{tpu_custom_call.1} parent=47 // pred_region
          %410 = dma.done %s403, 512
        $region52: #{tpu_custom_call.1} parent=47 // pred_fallthru
          _
        %s411 = sand.u32 %s29, 1
        %s412 = scalar_lea.sflag [#allocation6], %s411
        %s413 = sand.u32 %s87, 1
        %s414 = smul.addr %s413, 64
        %s415 = scalar_lea.vmem [#allocation5], %s414
        // Predicated region
        $region53: #{tpu_custom_call.1} parent=47 // pred_check
          %p416 = pneg %p100
        $region54: #{tpu_custom_call.1} parent=47 // pred_check_branch
          %418 = sbr.rel (%p416) target = $region56
        $region55: #{tpu_custom_call.1} parent=47 // pred_region
          %419 = dma.done %s412, 1024
        $region56: #{tpu_custom_call.1} parent=47 // pred_fallthru
          _
        %s420 = sand.u32 %s29, 1
        %s421 = scalar_lea.sflag [#allocation6], %s420
        %s422 = sand.u32 %s123, 1
        %s423 = smul.addr %s422, 32
        %s424 = scalar_lea.vmem [#allocation7], %s423
        // Predicated region
        $region57: #{tpu_custom_call.1} parent=47 // pred_check
          %p425 = pneg %p136
        $region58: #{tpu_custom_call.1} parent=47 // pred_check_branch
          %427 = sbr.rel (%p425) target = $region60
        $region59: #{tpu_custom_call.1} parent=47 // pred_region
          %428 = dma.done %s421, 512
        $region60: #{tpu_custom_call.1} parent=47 // pred_fallthru
          _
        // Predicated region
        $region61: #{tpu_custom_call.1} parent=47 // pred_check
          %p429 = pneg %p157
        $region62: #{tpu_custom_call.1} parent=47 // pred_check_branch
          %431 = sbr.rel (%p429) target = $region64
        $region63: #{tpu_custom_call.1} parent=47 // pred_region
          %432 = dma.done [#allocation9], 768
        $region64: #{tpu_custom_call.1} parent=47 // pred_fallthru
          _
        // Predicated region
        $region65: #{tpu_custom_call.1} parent=47 // pred_check
          %p433 = pneg %p178
        $region66: #{tpu_custom_call.1} parent=47 // pred_check_branch
          %435 = sbr.rel (%p433) target = $region68
        $region67: #{tpu_custom_call.1} parent=47 // pred_region
          %436 = dma.done [#allocation9], 16
        $region68: #{tpu_custom_call.1} parent=47 // pred_fallthru
          _
        // Predicated region
        $region69: #{tpu_custom_call.1} parent=47 // pred_check
          %p437 = pneg %p199
        $region70: #{tpu_custom_call.1} parent=47 // pred_check_branch
          %439 = sbr.rel (%p437) target = $region72
        $region71: #{tpu_custom_call.1} parent=47 // pred_region
          %440 = dma.done [#allocation12], 768
        $region72: #{tpu_custom_call.1} parent=47 // pred_fallthru
          _
        // Predicated region
        $region73: #{tpu_custom_call.1} parent=47 // pred_check
          %p441 = pneg %p220
        $region74: #{tpu_custom_call.1} parent=47 // pred_check_branch
          %443 = sbr.rel (%p441) target = $region76
        $region75: #{tpu_custom_call.1} parent=47 // pred_region
          %444 = dma.done [#allocation12], 16
        $region76: #{tpu_custom_call.1} parent=47 // pred_fallthru
          _
        %s445 = sand.u32 %s59, 1
        %s446 = scalar_lea.sflag [#allocation3], %s445
        %s447 = sand.u32 %s59, 1
        %s448 = smul.addr %s447, 32
        %s449 = scalar_lea.vmem [#allocation2], %s448
        %p450 = pneg %p72
        %p451 = pneg %p69
        %s452 = sand.u32 %s29, 1
        %s453 = scalar_lea.sflag [#allocation6], %s452
        %s454 = sand.u32 %s87, 1
        %s455 = smul.addr %s454, 64
        %s456 = scalar_lea.vmem [#allocation5], %s455
        %p457 = pneg %p100
        %p458 = pneg %p97
        %s459 = sand.u32 %s29, 1
        %s460 = scalar_lea.sflag [#allocation6], %s459
        %s461 = sand.u32 %s123, 1
        %s462 = smul.addr %s461, 32
        %s463 = scalar_lea.vmem [#allocation7], %s462
        %p464 = pneg %p136
        %p465 = pneg %p133
        %p466 = pneg %p157
        %p467 = pneg %p154
        %p468 = pneg %p178
        %p469 = pneg %p175
        %p470 = pneg %p199
        %p471 = pneg %p196
        %p472 = pneg %p220
        %p473 = pneg %p217
        %p474 = pneg %p248
        %p475 = pneg %p245
        %s476 = sand.u32 %s235, 1
        %s477 = scalar_lea.sflag [#allocation4], %s476
        %s478 = sand.u32 %s235, 1
        %s479 = smul.addr %s478, 64
        %s480 = scalar_lea.vmem [#allocation14], %s479
        %s481 = smul.u32 %s34, 2
        %s482 = ssub.s32 %s481, 1
        %p483 = scmp.gt.s32.totalorder %s482, 0
        %s484 = scalar_select %p483, %s482, 0
        %s485 = smul.u32 2, %s484
        %s486 = smul.u32 4, %s34
        %s487 = sadd.s32 %s34, 1
        %s488 = smul.u32 %s487, 2
        %p489 = scmp.lt.s32.totalorder %s488, 7
        %s490 = scalar_select %p489, %s488, 7
        %s491 = smul.u32 2, %s490
        %s492 = smul.u32 4, %s34
        %v493 = vld [vmem:[%s406] sm:$0xff]
        %v494 = vld [vmem:[%s406 + $0x8] sm:$0xff]
        %v495 = vld [vmem:[%s406 + $0x10] sm:$0xff]
        %v496 = vld [vmem:[%s406 + $0x18] sm:$0xff]
        %v497 = vld [vmem:[%s415] sm:$0xff]
        %v498 = vld [vmem:[%s415 + $0x8] sm:$0xff]
        %v499 = vld [vmem:[%s415 + $0x10] sm:$0xff]
        %v500 = vld [vmem:[%s415 + $0x18] sm:$0xff]
        %v501 = vld [vmem:[%s415 + $0x20] sm:$0xff]
        %v502 = vld [vmem:[%s415 + $0x28] sm:$0xff]
        %v503 = vld [vmem:[%s415 + $0x30] sm:$0xff]
        %v504 = vld [vmem:[%s415 + $0x38] sm:$0xff]
        %v505 = vld [vmem:[%s424] sm:$0xff]
        %v506 = vld [vmem:[%s424 + $0x8] sm:$0xff]
        %v507 = vld [vmem:[%s424 + $0x10] sm:$0xff]
        %v508 = vld [vmem:[%s424 + $0x18] sm:$0xff]
        %v509 = vld [vmem:[#allocation10] sm:$0x1]
        %v510 = vld [vmem:[#allocation13] sm:$0x1]
        %v519 = vrot.slane %v493, 1
        %v520 = vrot.slane %v495, 1
        %v521 = vrot.slane %v497, 1
        %v522 = vrot.slane %v499, 1
        %v523 = vrot.slane %v501, 1
        %v524 = vrot.slane %v503, 1
        %v525 = vrot.slane %v505, 1
        %v526 = vrot.slane %v507, 1
        %vm543 = vcmask 1040384
        %v544 = vrot.slane %v493, 7
        %v545 = vrot.slane %v494, 7
        %v546 = vsel %vm543, %v544, %v545
        %v547 = vrot.slane %v495, 7
        %v548 = vrot.slane %v496, 7
        %v549 = vsel %vm543, %v547, %v548
        %v550 = vrot.slane %v497, 7
        %v551 = vrot.slane %v498, 7
        %v552 = vsel %vm543, %v550, %v551
        %v553 = vrot.slane %v499, 7
        %v554 = vrot.slane %v500, 7
        %v555 = vsel %vm543, %v553, %v554
        %v556 = vrot.slane %v501, 7
        %v557 = vrot.slane %v502, 7
        %v558 = vsel %vm543, %v556, %v557
        %v559 = vrot.slane %v503, 7
        %v560 = vrot.slane %v504, 7
        %v561 = vsel %vm543, %v559, %v560
        %v562 = vrot.slane %v505, 7
        %v563 = vrot.slane %v506, 7
        %v564 = vsel %vm543, %v562, %v563
        %v565 = vrot.slane %v507, 7
        %v566 = vrot.slane %v508, 7
        %v567 = vsel %vm543, %v565, %v566
        %v584 = vsel %vm543, %v519, %v544
        %v585 = vsel %vm543, %v520, %v547
        %v586 = vsel %vm543, %v521, %v550
        %v587 = vsel %vm543, %v522, %v553
        %v588 = vsel %vm543, %v523, %v556
        %v589 = vsel %vm543, %v524, %v559
        %v590 = vsel %vm543, %v525, %v562
        %v591 = vsel %vm543, %v526, %v565
        %vm592 = vcmask 1046528
        %v593 = vrot.slane %v494, 1
        %v594 = vsel %vm592, %v519, %v593
        %v595 = vrot.slane %v496, 1
        %v596 = vsel %vm592, %v520, %v595
        %v597 = vrot.slane %v498, 1
        %v598 = vsel %vm592, %v521, %v597
        %v599 = vrot.slane %v500, 1
        %v600 = vsel %vm592, %v522, %v599
        %v601 = vrot.slane %v502, 1
        %v602 = vsel %vm592, %v523, %v601
        %v603 = vrot.slane %v504, 1
        %v604 = vsel %vm592, %v524, %v603
        %v605 = vrot.slane %v506, 1
        %v606 = vsel %vm592, %v525, %v605
        %v607 = vrot.slane %v508, 1
        %v608 = vsel %vm592, %v526, %v607
        %v625 = vsel %vm592, %v593, %v545
        %v626 = vsel %vm592, %v595, %v548
        %v627 = vsel %vm592, %v597, %v551
        %v628 = vsel %vm592, %v599, %v554
        %v629 = vsel %vm592, %v601, %v557
        %v630 = vsel %vm592, %v603, %v560
        %v631 = vsel %vm592, %v605, %v563
        %v632 = vsel %vm592, %v607, %v566
        %633 = vrot.lane.b32.xlu0 %v493, 4
        %v634 = vpop.permute.xlu0 %633
        %635 = vrot.lane.b32.xlu0 %v494, 4
        %v636 = vpop.permute.xlu0 %635
        %637 = vrot.lane.b32.xlu0 %v495, 4
        %v638 = vpop.permute.xlu0 %637
        %639 = vrot.lane.b32.xlu0 %v496, 4
        %v640 = vpop.permute.xlu0 %639
        %641 = vrot.lane.b32.xlu0 %v497, 4
        %v642 = vpop.permute.xlu0 %641
        %643 = vrot.lane.b32.xlu0 %v498, 4
        %v644 = vpop.permute.xlu0 %643
        %645 = vrot.lane.b32.xlu0 %v499, 4
        %v646 = vpop.permute.xlu0 %645
        %647 = vrot.lane.b32.xlu0 %v500, 4
        %v648 = vpop.permute.xlu0 %647
        %649 = vrot.lane.b32.xlu0 %v501, 4
        %v650 = vpop.permute.xlu0 %649
        %651 = vrot.lane.b32.xlu0 %v502, 4
        %v652 = vpop.permute.xlu0 %651
        %653 = vrot.lane.b32.xlu0 %v503, 4
        %v654 = vpop.permute.xlu0 %653
        %655 = vrot.lane.b32.xlu0 %v504, 4
        %v656 = vpop.permute.xlu0 %655
        %657 = vrot.lane.b32.xlu0 %v505, 4
        %v658 = vpop.permute.xlu0 %657
        %659 = vrot.lane.b32.xlu0 %v506, 4
        %v660 = vpop.permute.xlu0 %659
        %661 = vrot.lane.b32.xlu0 %v507, 4
        %v662 = vpop.permute.xlu0 %661
        %663 = vrot.lane.b32.xlu0 %v508, 4
        %v664 = vpop.permute.xlu0 %663
        %689 = vrot.lane.b32.xlu0 %v594, 8
        %v690 = vpop.permute.xlu0 %689
        %691 = vrot.lane.b32.xlu0 %v625, 8
        %v692 = vpop.permute.xlu0 %691
        %693 = vrot.lane.b32.xlu0 %v596, 8
        %v694 = vpop.permute.xlu0 %693
        %695 = vrot.lane.b32.xlu0 %v626, 8
        %v696 = vpop.permute.xlu0 %695
        %697 = vrot.lane.b32.xlu0 %v598, 8
        %v698 = vpop.permute.xlu0 %697
        %699 = vrot.lane.b32.xlu0 %v627, 8
        %v700 = vpop.permute.xlu0 %699
        %701 = vrot.lane.b32.xlu0 %v600, 8
        %v702 = vpop.permute.xlu0 %701
        %703 = vrot.lane.b32.xlu0 %v628, 8
        %v704 = vpop.permute.xlu0 %703
        %705 = vrot.lane.b32.xlu0 %v602, 8
        %v706 = vpop.permute.xlu0 %705
        %707 = vrot.lane.b32.xlu0 %v629, 8
        %v708 = vpop.permute.xlu0 %707
        %709 = vrot.lane.b32.xlu0 %v604, 8
        %v710 = vpop.permute.xlu0 %709
        %711 = vrot.lane.b32.xlu0 %v630, 8
        %v712 = vpop.permute.xlu0 %711
        %713 = vrot.lane.b32.xlu0 %v606, 8
        %v714 = vpop.permute.xlu0 %713
        %715 = vrot.lane.b32.xlu0 %v631, 8
        %v716 = vpop.permute.xlu0 %715
        %717 = vrot.lane.b32.xlu0 %v608, 8
        %v718 = vpop.permute.xlu0 %717
        %719 = vrot.lane.b32.xlu0 %v632, 8
        %v720 = vpop.permute.xlu0 %719
        %vm737 = vcmask 31744
        %v738 = vsel %vm737, %v584, %v634
        %v739 = vsel %vm737, %v546, %v636
        %v740 = vsel %vm737, %v585, %v638
        %v741 = vsel %vm737, %v549, %v640
        %v742 = vsel %vm737, %v586, %v642
        %v743 = vsel %vm737, %v552, %v644
        %v744 = vsel %vm737, %v587, %v646
        %v745 = vsel %vm737, %v555, %v648
        %v746 = vsel %vm737, %v588, %v650
        %v747 = vsel %vm737, %v558, %v652
        %v748 = vsel %vm737, %v589, %v654
        %v749 = vsel %vm737, %v561, %v656
        %v750 = vsel %vm737, %v590, %v658
        %v751 = vsel %vm737, %v564, %v660
        %v752 = vsel %vm737, %v591, %v662
        %v753 = vsel %vm737, %v567, %v664
        %vm754 = vcmask 64512
        %v755 = vsel %vm754, %v738, %v690
        %v756 = vsel %vm754, %v739, %v692
        %v757 = vsel %vm754, %v740, %v694
        %v758 = vsel %vm754, %v741, %v696
        %v759 = vsel %vm754, %v742, %v698
        %v760 = vsel %vm754, %v743, %v700
        %v761 = vsel %vm754, %v744, %v702
        %v762 = vsel %vm754, %v745, %v704
        %v763 = vsel %vm754, %v746, %v706
        %v764 = vsel %vm754, %v747, %v708
        %v765 = vsel %vm754, %v748, %v710
        %v766 = vsel %vm754, %v749, %v712
        %v767 = vsel %vm754, %v750, %v714
        %v768 = vsel %vm754, %v751, %v716
        %v769 = vsel %vm754, %v752, %v718
        %v770 = vsel %vm754, %v753, %v720
        %v771 = vld [vmem:[#allocation8] sm:$0xff]
        %v772 = vld [vmem:[#allocation8 + $0x8] sm:$0xf]
        %s773 = scalar_lea.vmem [#allocation8], 16
        %v774 = vld [vmem:[%s773] sm:$0xff]
        %v775 = vld [vmem:[%s773 + $0x8] sm:$0xf]
        %vm776 = vcmask 97280
        %v778 = vsel %vm776, %v757, 0
        %v781 = vsel %vm776, %v758, 0
        %v784 = vsel %vm776, %v759, 0
        %v787 = vsel %vm776, %v760, 0
        %v790 = vsel %vm776, %v761, 0
        %v793 = vsel %vm776, %v762, 0
        %v796 = vsel %vm776, %v763, 0
        %v799 = vsel %vm776, %v764, 0
        %v802 = vsel %vm776, %v765, 0
        %v805 = vsel %vm776, %v766, 0
        %v808 = vsel %vm776, %v767, 0
        %v811 = vsel %vm776, %v768, 0
        %vm813 = vcmask 1043456
        %v815 = vsel %vm813, %v775, 0
        %817 = vmatprep.subr.mxu0 0.0
        %818 = vmatpush1.msra.mxu0 %v774
        %819 = vmatprep.subr.mxu0 0.0
        %820 = vmatpush1.msra.mxu0 %v815
        %821 = vmatprep.subr.mxu0 0.0
        %822 = vmatpush1.msra.mxu0 0.0
        %823 = vmatprep.subr.mxu0 0.0
        %824 = vmatpush1.msra.mxu0 0.0
        %825 = vmatprep.subr.mxu0 0.0
        %826 = vmatpush1.msra.mxu0 0.0
        %827 = vmatprep.subr.mxu0 0.0
        %828 = vmatpush1.msra.mxu0 0.0
        %829 = vmatprep.subr.mxu0 0.0
        %830 = vmatpush1.msra.mxu0 0.0
        %831 = vmatprep.subr.mxu0 0.0
        %832 = vmatpush1.msra.mxu0 0.0
        %833 = vmatprep.subr.mxu0 0.0
        %834 = vmatpush1.msra.mxu0 0.0
        %835 = vmatprep.subr.mxu0 0.0
        %836 = vmatpush1.msra.mxu0 0.0
        %837 = vmatprep.subr.mxu0 0.0
        %838 = vmatpush1.msra.mxu0 0.0
        %839 = vmatprep.subr.mxu0 0.0
        %840 = vmatpush1.msra.mxu0 0.0
        %841 = vmatprep.subr.mxu0 0.0
        %842 = vmatpush1.msra.mxu0 0.0
        %843 = vmatprep.subr.mxu0 0.0
        %844 = vmatpush1.msra.mxu0 0.0
        %845 = vmatprep.subr.mxu0 0.0
        %846 = vmatpush1.msra.mxu0 0.0
        %847 = vmatprep.subr.mxu0 0.0
        %848 = vmatpush1.msra.mxu0 0.0
        %849 = vmatprep.subr.mxu0 0.0
        %850 = vmatpush1.msra.mxu0 0.0
        %851 = vmatprep.subr.mxu0 0.0
        %852 = vmatpush1.msra.mxu0 0.0
        %853 = vmatprep.subr.mxu0 0.0
        %854 = vmatpush1.msra.mxu0 0.0
        %855 = vmatprep.subr.mxu0 0.0
        %856 = vmatpush1.msra.mxu0 0.0
        %857 = vmatprep.subr.mxu0 0.0
        %858 = vmatpush1.msra.mxu0 0.0
        %859 = vmatprep.subr.mxu0 0.0
        %860 = vmatpush1.msra.mxu0 0.0
        %861 = vmatprep.subr.mxu0 0.0
        %862 = vmatpush1.msra.mxu0 0.0
        %863 = vmatprep.subr.mxu0 0.0
        %864 = vmatpush1.msra.mxu0 0.0
        %865 = vmatprep.subr.mxu0 0.0
        %866 = vmatpush1.msra.mxu0 0.0
        %867 = vmatprep.subr.mxu0 0.0
        %868 = vmatpush1.msra.mxu0 0.0
        %869 = vmatprep.subr.mxu0 0.0
        %870 = vmatpush1.msra.mxu0 0.0
        %871 = vmatprep.subr.mxu0 0.0
        %872 = vmatpush1.msra.mxu0 0.0
        %873 = vmatprep.subr.mxu0 0.0
        %874 = vmatpush1.msra.mxu0 0.0
        %875 = vmatprep.subr.mxu0 0.0
        %876 = vmatpush1.msra.mxu0 0.0
        %877 = vmatprep.subr.mxu0 0.0
        %878 = vmatpush1.msra.mxu0 0.0
        %879 = vmatprep.subr.mxu0 0.0
        %880 = vmatpush1.msra.mxu0 0.0
        %881 = vmatprep.mubr.f32.mxu0 0.0
        %882 = vmatmul.mubr.f32.gmra.mrb[0].mxu0 %v778
        %v883 = vpop.f32.mrb[0].mxu0
        %v884 = vadd.f32 0.0, %v883
        %v885 = vpop.f32.mrb[0].mxu0
        %886 = vmatprep.mubr.f32.mxu0 0.0
        %887 = vmatmul.mubr.f32.gmra.mrb[0].mxu0 %v781
        %v888 = vpop.f32.mrb[0].mxu0
        %v889 = vadd.f32 0.0, %v888
        %v890 = vpop.f32.mrb[0].mxu0
        %891 = vmatprep.mubr.f32.mxu0 0.0
        %892 = vmatmul.mubr.f32.gmra.mrb[0].mxu0 %v784
        %v893 = vpop.f32.mrb[0].mxu0
        %v894 = vadd.f32 0.0, %v893
        %v895 = vpop.f32.mrb[0].mxu0
        %896 = vmatprep.mubr.f32.mxu0 0.0
        %897 = vmatmul.mubr.f32.gmra.mrb[0].mxu0 %v787
        %v898 = vpop.f32.mrb[0].mxu0
        %v899 = vadd.f32 0.0, %v898
        %v900 = vpop.f32.mrb[0].mxu0
        %901 = vmatprep.mubr.f32.mxu0 0.0
        %902 = vmatmul.mubr.f32.gmra.mrb[0].mxu0 %v790
        %v903 = vpop.f32.mrb[0].mxu0
        %v904 = vadd.f32 0.0, %v903
        %v905 = vpop.f32.mrb[0].mxu0
        %906 = vmatprep.mubr.f32.mxu0 0.0
        %907 = vmatmul.mubr.f32.gmra.mrb[0].mxu0 %v793
        %v908 = vpop.f32.mrb[0].mxu0
        %v909 = vadd.f32 0.0, %v908
        %v910 = vpop.f32.mrb[0].mxu0
        %911 = vmatprep.mubr.f32.mxu0 0.0
        %912 = vmatmul.mubr.f32.gmra.mrb[0].mxu0 %v796
        %v913 = vpop.f32.mrb[0].mxu0
        %v914 = vadd.f32 0.0, %v913
        %v915 = vpop.f32.mrb[0].mxu0
        %916 = vmatprep.mubr.f32.mxu0 0.0
        %917 = vmatmul.mubr.f32.gmra.mrb[0].mxu0 %v799
        %v918 = vpop.f32.mrb[0].mxu0
        %v919 = vadd.f32 0.0, %v918
        %v920 = vpop.f32.mrb[0].mxu0
        %921 = vmatprep.mubr.f32.mxu0 0.0
        %922 = vmatmul.mubr.f32.gmra.mrb[0].mxu0 %v802
        %v923 = vpop.f32.mrb[0].mxu0
        %v924 = vadd.f32 0.0, %v923
        %v925 = vpop.f32.mrb[0].mxu0
        %926 = vmatprep.mubr.f32.mxu0 0.0
        %927 = vmatmul.mubr.f32.gmra.mrb[0].mxu0 %v805
        %v928 = vpop.f32.mrb[0].mxu0
        %v929 = vadd.f32 0.0, %v928
        %v930 = vpop.f32.mrb[0].mxu0
        %931 = vmatprep.mubr.f32.mxu0 0.0
        %932 = vmatmul.mubr.f32.gmra.mrb[0].mxu0 %v808
        %v933 = vpop.f32.mrb[0].mxu0
        %v934 = vadd.f32 0.0, %v933
        %v935 = vpop.f32.mrb[0].mxu0
        %936 = vmatprep.mubr.f32.mxu0 0.0
        %937 = vmatmul.mubr.f32.gmra.mrb[0].mxu0 %v811
        %v938 = vpop.f32.mrb[0].mxu0
        %v939 = vadd.f32 0.0, %v938
        %v940 = vpop.f32.mrb[0].mxu0
        %941 = vdwg.mxu0
        %v943 = vsel %vm776, %v755, 0
        %v946 = vsel %vm776, %v756, 0
        %v949 = vsel %vm813, %v772, 0
        %951 = vmatprep.subr.mxu0 0.0
        %952 = vmatpush1.msra.mxu0 %v771
        %953 = vmatprep.subr.mxu0 0.0
        %954 = vmatpush1.msra.mxu0 %v949
        %955 = vmatprep.subr.mxu0 0.0
        %956 = vmatpush1.msra.mxu0 0.0
        %957 = vmatprep.subr.mxu0 0.0
        %958 = vmatpush1.msra.mxu0 0.0
        %959 = vmatprep.subr.mxu0 0.0
        %960 = vmatpush1.msra.mxu0 0.0
        %961 = vmatprep.subr.mxu0 0.0
        %962 = vmatpush1.msra.mxu0 0.0
        %963 = vmatprep.subr.mxu0 0.0
        %964 = vmatpush1.msra.mxu0 0.0
        %965 = vmatprep.subr.mxu0 0.0
        %966 = vmatpush1.msra.mxu0 0.0
        %967 = vmatprep.subr.mxu0 0.0
        %968 = vmatpush1.msra.mxu0 0.0
        %969 = vmatprep.subr.mxu0 0.0
        %970 = vmatpush1.msra.mxu0 0.0
        %971 = vmatprep.subr.mxu0 0.0
        %972 = vmatpush1.msra.mxu0 0.0
        %973 = vmatprep.subr.mxu0 0.0
        %974 = vmatpush1.msra.mxu0 0.0
        %975 = vmatprep.subr.mxu0 0.0
        %976 = vmatpush1.msra.mxu0 0.0
        %977 = vmatprep.subr.mxu0 0.0
        %978 = vmatpush1.msra.mxu0 0.0
        %979 = vmatprep.subr.mxu0 0.0
        %980 = vmatpush1.msra.mxu0 0.0
        %981 = vmatprep.subr.mxu0 0.0
        %982 = vmatpush1.msra.mxu0 0.0
        %983 = vmatprep.subr.mxu0 0.0
        %984 = vmatpush1.msra.mxu0 0.0
        %985 = vmatprep.subr.mxu0 0.0
        %986 = vmatpush1.msra.mxu0 0.0
        %987 = vmatprep.subr.mxu0 0.0
        %988 = vmatpush1.msra.mxu0 0.0
        %989 = vmatprep.subr.mxu0 0.0
        %990 = vmatpush1.msra.mxu0 0.0
        %991 = vmatprep.subr.mxu0 0.0
        %992 = vmatpush1.msra.mxu0 0.0
        %993 = vmatprep.subr.mxu0 0.0
        %994 = vmatpush1.msra.mxu0 0.0
        %995 = vmatprep.subr.mxu0 0.0
        %996 = vmatpush1.msra.mxu0 0.0
        %997 = vmatprep.subr.mxu0 0.0
        %998 = vmatpush1.msra.mxu0 0.0
        %999 = vmatprep.subr.mxu0 0.0
        %1000 = vmatpush1.msra.mxu0 0.0
        %1001 = vmatprep.subr.mxu0 0.0
        %1002 = vmatpush1.msra.mxu0 0.0
        %1003 = vmatprep.subr.mxu0 0.0
        %1004 = vmatpush1.msra.mxu0 0.0
        %1005 = vmatprep.subr.mxu0 0.0
        %1006 = vmatpush1.msra.mxu0 0.0
        %1007 = vmatprep.subr.mxu0 0.0
        %1008 = vmatpush1.msra.mxu0 0.0
        %1009 = vmatprep.subr.mxu0 0.0
        %1010 = vmatpush1.msra.mxu0 0.0
        %1011 = vmatprep.subr.mxu0 0.0
        %1012 = vmatpush1.msra.mxu0 0.0
        %1013 = vmatprep.subr.mxu0 0.0
        %1014 = vmatpush1.msra.mxu0 0.0
        %1015 = vmatprep.mubr.f32.mxu0 0.0
        %1016 = vmatmul.mubr.f32.gmra.mrb[0].mxu0 %v943
        %v1017 = vpop.f32.mrb[0].mxu0
        %v1018 = vadd.f32 %v884, %v1017
        %v1019 = vpop.f32.mrb[0].mxu0
        %1020 = vmatprep.mubr.f32.mxu0 0.0
        %1021 = vmatmul.mubr.f32.gmra.mrb[0].mxu0 %v946
        %v1022 = vpop.f32.mrb[0].mxu0
        %v1023 = vadd.f32 %v889, %v1022
        %v1024 = vpop.f32.mrb[0].mxu0
        %1025 = vmatprep.mubr.f32.mxu0 0.0
        %1026 = vmatmul.mubr.f32.gmra.mrb[0].mxu0 %v778
        %v1027 = vpop.f32.mrb[0].mxu0
        %v1028 = vadd.f32 %v894, %v1027
        %v1029 = vpop.f32.mrb[0].mxu0
        %1030 = vmatprep.mubr.f32.mxu0 0.0
        %1031 = vmatmul.mubr.f32.gmra.mrb[0].mxu0 %v781
        %v1032 = vpop.f32.mrb[0].mxu0
        %v1033 = vadd.f32 %v899, %v1032
        %v1034 = vpop.f32.mrb[0].mxu0
        %1035 = vmatprep.mubr.f32.mxu0 0.0
        %1036 = vmatmul.mubr.f32.gmra.mrb[0].mxu0 %v784
        %v1037 = vpop.f32.mrb[0].mxu0
        %v1038 = vadd.f32 %v904, %v1037
        %v1039 = vpop.f32.mrb[0].mxu0
        %1040 = vmatprep.mubr.f32.mxu0 0.0
        %1041 = vmatmul.mubr.f32.gmra.mrb[0].mxu0 %v787
        %v1042 = vpop.f32.mrb[0].mxu0
        %v1043 = vadd.f32 %v909, %v1042
        %v1044 = vpop.f32.mrb[0].mxu0
        %1045 = vmatprep.mubr.f32.mxu0 0.0
        %1046 = vmatmul.mubr.f32.gmra.mrb[0].mxu0 %v790
        %v1047 = vpop.f32.mrb[0].mxu0
        %v1048 = vadd.f32 %v914, %v1047
        %v1049 = vpop.f32.mrb[0].mxu0
        %1050 = vmatprep.mubr.f32.mxu0 0.0
        %1051 = vmatmul.mubr.f32.gmra.mrb[0].mxu0 %v793
        %v1052 = vpop.f32.mrb[0].mxu0
        %v1053 = vadd.f32 %v919, %v1052
        %v1054 = vpop.f32.mrb[0].mxu0
        %1055 = vmatprep.mubr.f32.mxu0 0.0
        %1056 = vmatmul.mubr.f32.gmra.mrb[0].mxu0 %v796
        %v1057 = vpop.f32.mrb[0].mxu0
        %v1058 = vadd.f32 %v924, %v1057
        %v1059 = vpop.f32.mrb[0].mxu0
        %1060 = vmatprep.mubr.f32.mxu0 0.0
        %1061 = vmatmul.mubr.f32.gmra.mrb[0].mxu0 %v799
        %v1062 = vpop.f32.mrb[0].mxu0
        %v1063 = vadd.f32 %v929, %v1062
        %v1064 = vpop.f32.mrb[0].mxu0
        %1065 = vmatprep.mubr.f32.mxu0 0.0
        %1066 = vmatmul.mubr.f32.gmra.mrb[0].mxu0 %v802
        %v1067 = vpop.f32.mrb[0].mxu0
        %v1068 = vadd.f32 %v934, %v1067
        %v1069 = vpop.f32.mrb[0].mxu0
        %1070 = vmatprep.mubr.f32.mxu0 0.0
        %1071 = vmatmul.mubr.f32.gmra.mrb[0].mxu0 %v805
        %v1072 = vpop.f32.mrb[0].mxu0
        %v1073 = vadd.f32 %v939, %v1072
        %v1074 = vpop.f32.mrb[0].mxu0
        %1075 = vdwg.mxu0
        %s1076 = scalar_lea.vmem [#allocation8], 32
        %v1077 = vld [vmem:[%s1076] sm:$0xff]
        %v1078 = vld [vmem:[%s1076 + $0x8] sm:$0xf]
        %v1080 = vsel %vm776, %v769, 0
        %v1083 = vsel %vm776, %v770, 0
        %v1086 = vsel %vm813, %v1078, 0
        %1088 = vmatprep.subr.mxu0 0.0
        %1089 = vmatpush1.msra.mxu0 %v1077
        %1090 = vmatprep.subr.mxu0 0.0
        %1091 = vmatpush1.msra.mxu0 %v1086
        %1092 = vmatprep.subr.mxu0 0.0
        %1093 = vmatpush1.msra.mxu0 0.0
        %1094 = vmatprep.subr.mxu0 0.0
        %1095 = vmatpush1.msra.mxu0 0.0
        %1096 = vmatprep.subr.mxu0 0.0
        %1097 = vmatpush1.msra.mxu0 0.0
        %1098 = vmatprep.subr.mxu0 0.0
        %1099 = vmatpush1.msra.mxu0 0.0
        %1100 = vmatprep.subr.mxu0 0.0
        %1101 = vmatpush1.msra.mxu0 0.0
        %1102 = vmatprep.subr.mxu0 0.0
        %1103 = vmatpush1.msra.mxu0 0.0
        %1104 = vmatprep.subr.mxu0 0.0
        %1105 = vmatpush1.msra.mxu0 0.0
        %1106 = vmatprep.subr.mxu0 0.0
        %1107 = vmatpush1.msra.mxu0 0.0
        %1108 = vmatprep.subr.mxu0 0.0
        %1109 = vmatpush1.msra.mxu0 0.0
        %1110 = vmatprep.subr.mxu0 0.0
        %1111 = vmatpush1.msra.mxu0 0.0
        %1112 = vmatprep.subr.mxu0 0.0
        %1113 = vmatpush1.msra.mxu0 0.0
        %1114 = vmatprep.subr.mxu0 0.0
        %1115 = vmatpush1.msra.mxu0 0.0
        %1116 = vmatprep.subr.mxu0 0.0
        %1117 = vmatpush1.msra.mxu0 0.0
        %1118 = vmatprep.subr.mxu0 0.0
        %1119 = vmatpush1.msra.mxu0 0.0
        %1120 = vmatprep.subr.mxu0 0.0
        %1121 = vmatpush1.msra.mxu0 0.0
        %1122 = vmatprep.subr.mxu0 0.0
        %1123 = vmatpush1.msra.mxu0 0.0
        %1124 = vmatprep.subr.mxu0 0.0
        %1125 = vmatpush1.msra.mxu0 0.0
        %1126 = vmatprep.subr.mxu0 0.0
        %1127 = vmatpush1.msra.mxu0 0.0
        %1128 = vmatprep.subr.mxu0 0.0
        %1129 = vmatpush1.msra.mxu0 0.0
        %1130 = vmatprep.subr.mxu0 0.0
        %1131 = vmatpush1.msra.mxu0 0.0
        %1132 = vmatprep.subr.mxu0 0.0
        %1133 = vmatpush1.msra.mxu0 0.0
        %1134 = vmatprep.subr.mxu0 0.0
        %1135 = vmatpush1.msra.mxu0 0.0
        %1136 = vmatprep.subr.mxu0 0.0
        %1137 = vmatpush1.msra.mxu0 0.0
        %1138 = vmatprep.subr.mxu0 0.0
        %1139 = vmatpush1.msra.mxu0 0.0
        %1140 = vmatprep.subr.mxu0 0.0
        %1141 = vmatpush1.msra.mxu0 0.0
        %1142 = vmatprep.subr.mxu0 0.0
        %1143 = vmatpush1.msra.mxu0 0.0
        %1144 = vmatprep.subr.mxu0 0.0
        %1145 = vmatpush1.msra.mxu0 0.0
        %1146 = vmatprep.subr.mxu0 0.0
        %1147 = vmatpush1.msra.mxu0 0.0
        %1148 = vmatprep.subr.mxu0 0.0
        %1149 = vmatpush1.msra.mxu0 0.0
        %1150 = vmatprep.subr.mxu0 0.0
        %1151 = vmatpush1.msra.mxu0 0.0
        %1152 = vmatprep.mubr.f32.mxu0 0.0
        %1153 = vmatmul.mubr.f32.gmra.mrb[0].mxu0 %v784
        %v1154 = vpop.f32.mrb[0].mxu0
        %v1155 = vadd.f32 0.0, %v1154
        %v1156 = vpop.f32.mrb[0].mxu0
        %1157 = vmatprep.mubr.f32.mxu0 0.0
        %1158 = vmatmul.mubr.f32.gmra.mrb[0].mxu0 %v787
        %v1159 = vpop.f32.mrb[0].mxu0
        %v1160 = vadd.f32 0.0, %v1159
        %v1161 = vpop.f32.mrb[0].mxu0
        %1162 = vmatprep.mubr.f32.mxu0 0.0
        %1163 = vmatmul.mubr.f32.gmra.mrb[0].mxu0 %v790
        %v1164 = vpop.f32.mrb[0].mxu0
        %v1165 = vadd.f32 0.0, %v1164
        %v1166 = vpop.f32.mrb[0].mxu0
        %1167 = vmatprep.mubr.f32.mxu0 0.0
        %1168 = vmatmul.mubr.f32.gmra.mrb[0].mxu0 %v793
        %v1169 = vpop.f32.mrb[0].mxu0
        %v1170 = vadd.f32 0.0, %v1169
        %v1171 = vpop.f32.mrb[0].mxu0
        %1172 = vmatprep.mubr.f32.mxu0 0.0
        %1173 = vmatmul.mubr.f32.gmra.mrb[0].mxu0 %v796
        %v1174 = vpop.f32.mrb[0].mxu0
        %v1175 = vadd.f32 0.0, %v1174
        %v1176 = vpop.f32.mrb[0].mxu0
        %1177 = vmatprep.mubr.f32.mxu0 0.0
        %1178 = vmatmul.mubr.f32.gmra.mrb[0].mxu0 %v799
        %v1179 = vpop.f32.mrb[0].mxu0
        %v1180 = vadd.f32 0.0, %v1179
        %v1181 = vpop.f32.mrb[0].mxu0
        %1182 = vmatprep.mubr.f32.mxu0 0.0
        %1183 = vmatmul.mubr.f32.gmra.mrb[0].mxu0 %v802
        %v1184 = vpop.f32.mrb[0].mxu0
        %v1185 = vadd.f32 0.0, %v1184
        %v1186 = vpop.f32.mrb[0].mxu0
        %1187 = vmatprep.mubr.f32.mxu0 0.0
        %1188 = vmatmul.mubr.f32.gmra.mrb[0].mxu0 %v805
        %v1189 = vpop.f32.mrb[0].mxu0
        %v1190 = vadd.f32 0.0, %v1189
        %v1191 = vpop.f32.mrb[0].mxu0
        %1192 = vmatprep.mubr.f32.mxu0 0.0
        %1193 = vmatmul.mubr.f32.gmra.mrb[0].mxu0 %v808
        %v1194 = vpop.f32.mrb[0].mxu0
        %v1195 = vadd.f32 0.0, %v1194
        %v1196 = vpop.f32.mrb[0].mxu0
        %1197 = vmatprep.mubr.f32.mxu0 0.0
        %1198 = vmatmul.mubr.f32.gmra.mrb[0].mxu0 %v811
        %v1199 = vpop.f32.mrb[0].mxu0
        %v1200 = vadd.f32 0.0, %v1199
        %v1201 = vpop.f32.mrb[0].mxu0
        %1202 = vmatprep.mubr.f32.mxu0 0.0
        %1203 = vmatmul.mubr.f32.gmra.mrb[0].mxu0 %v1080
        %v1204 = vpop.f32.mrb[0].mxu0
        %v1205 = vadd.f32 0.0, %v1204
        %v1206 = vpop.f32.mrb[0].mxu0
        %1207 = vmatprep.mubr.f32.mxu0 0.0
        %1208 = vmatmul.mubr.f32.gmra.mrb[0].mxu0 %v1083
        %v1209 = vpop.f32.mrb[0].mxu0
        %v1210 = vadd.f32 0.0, %v1209
        %v1211 = vpop.f32.mrb[0].mxu0
        %1212 = vdwg.mxu0
        %v1213 = vadd.f32 %v1018, %v1155
        %v1214 = vadd.f32 %v1023, %v1160
        %v1215 = vadd.f32 %v1028, %v1165
        %v1216 = vadd.f32 %v1033, %v1170
        %v1217 = vadd.f32 %v1038, %v1175
        %v1218 = vadd.f32 %v1043, %v1180
        %v1219 = vadd.f32 %v1048, %v1185
        %v1220 = vadd.f32 %v1053, %v1190
        %v1221 = vadd.f32 %v1058, %v1195
        %v1222 = vadd.f32 %v1063, %v1200
        %v1223 = vadd.f32 %v1068, %v1205
        %v1224 = vadd.f32 %v1073, %v1210
        %v1226 = vlaneseq
        %v1227 = vshrl.u32 %v1226, 7
        %v1228 = vsub.s32 0, %v1227
        %v1229 = vrot.slane %v509, %v1228
        %v1231 = vadd.f32 %v1213, %v1229
        %v1232 = vadd.f32 %v1214, %v1229
        %v1233 = vadd.f32 %v1215, %v1229
        %v1234 = vadd.f32 %v1216, %v1229
        %v1235 = vadd.f32 %v1217, %v1229
        %v1236 = vadd.f32 %v1218, %v1229
        %v1237 = vadd.f32 %v1219, %v1229
        %v1238 = vadd.f32 %v1220, %v1229
        %v1239 = vadd.f32 %v1221, %v1229
        %v1240 = vadd.f32 %v1222, %v1229
        %v1241 = vadd.f32 %v1223, %v1229
        %v1242 = vadd.f32 %v1224, %v1229
        %v1243 = vmax.f32 %v1231, 0.0
        %v1244 = vmax.f32 %v1232, 0.0
        %v1245 = vmax.f32 %v1233, 0.0
        %v1246 = vmax.f32 %v1234, 0.0
        %v1247 = vmax.f32 %v1235, 0.0
        %v1248 = vmax.f32 %v1236, 0.0
        %v1249 = vmax.f32 %v1237, 0.0
        %v1250 = vmax.f32 %v1238, 0.0
        %v1251 = vmax.f32 %v1239, 0.0
        %v1252 = vmax.f32 %v1240, 0.0
        %v1253 = vmax.f32 %v1241, 0.0
        %v1254 = vmax.f32 %v1242, 0.0
        %p1255 = scmp.eq.s32.totalorder %s34, 0
        %s1256 = scalar_select %p1255, 1, 0
        %v1257 = vstv %s1256
        %vm1258 = vcmp.eq.s32.totalorder %v1257, 1
        %v1259 = vsel %vm1258, %v1247, %v1243
        %v1260 = vsel %vm1258, %v1248, %v1244
        %p1261 = scmp.eq.s32.totalorder %s34, 3
        %s1262 = scalar_select %p1261, 1, 0
        %v1263 = vstv %s1262
        %vm1264 = vcmp.eq.s32.totalorder %v1263, 1
        %v1265 = vsel %vm1264, %v1249, %v1253
        %v1266 = vsel %vm1264, %v1250, %v1254
        %v1273 = vrot.slane %v1259, 1
        %v1274 = vrot.slane %v1245, 1
        %v1275 = vrot.slane %v1247, 1
        %v1276 = vrot.slane %v1249, 1
        %v1277 = vrot.slane %v1251, 1
        %v1278 = vrot.slane %v1265, 1
        %v1291 = vrot.slane %v1259, 7
        %v1292 = vrot.slane %v1260, 7
        %v1293 = vsel %vm543, %v1291, %v1292
        %v1294 = vrot.slane %v1245, 7
        %v1295 = vrot.slane %v1246, 7
        %v1296 = vsel %vm543, %v1294, %v1295
        %v1297 = vrot.slane %v1247, 7
        %v1298 = vrot.slane %v1248, 7
        %v1299 = vsel %vm543, %v1297, %v1298
        %v1300 = vrot.slane %v1249, 7
        %v1301 = vrot.slane %v1250, 7
        %v1302 = vsel %vm543, %v1300, %v1301
        %v1303 = vrot.slane %v1251, 7
        %v1304 = vrot.slane %v1252, 7
        %v1305 = vsel %vm543, %v1303, %v1304
        %v1306 = vrot.slane %v1265, 7
        %v1307 = vrot.slane %v1266, 7
        %v1308 = vsel %vm543, %v1306, %v1307
        %v1321 = vsel %vm543, %v1273, %v1291
        %v1322 = vsel %vm543, %v1274, %v1294
        %v1323 = vsel %vm543, %v1275, %v1297
        %v1324 = vsel %vm543, %v1276, %v1300
        %v1325 = vsel %vm543, %v1277, %v1303
        %v1326 = vsel %vm543, %v1278, %v1306
        %v1327 = vrot.slane %v1260, 1
        %v1328 = vsel %vm592, %v1273, %v1327
        %v1329 = vrot.slane %v1246, 1
        %v1330 = vsel %vm592, %v1274, %v1329
        %v1331 = vrot.slane %v1248, 1
        %v1332 = vsel %vm592, %v1275, %v1331
        %v1333 = vrot.slane %v1250, 1
        %v1334 = vsel %vm592, %v1276, %v1333
        %v1335 = vrot.slane %v1252, 1
        %v1336 = vsel %vm592, %v1277, %v1335
        %v1337 = vrot.slane %v1266, 1
        %v1338 = vsel %vm592, %v1278, %v1337
        %v1351 = vsel %vm592, %v1327, %v1292
        %v1352 = vsel %vm592, %v1329, %v1295
        %v1353 = vsel %vm592, %v1331, %v1298
        %v1354 = vsel %vm592, %v1333, %v1301
        %v1355 = vsel %vm592, %v1335, %v1304
        %v1356 = vsel %vm592, %v1337, %v1307
        %1357 = vrot.lane.b32.xlu0 %v1259, 4
        %v1358 = vpop.permute.xlu0 %1357
        %1359 = vrot.lane.b32.xlu0 %v1260, 4
        %v1360 = vpop.permute.xlu0 %1359
        %1361 = vrot.lane.b32.xlu0 %v1245, 4
        %v1362 = vpop.permute.xlu0 %1361
        %1363 = vrot.lane.b32.xlu0 %v1246, 4
        %v1364 = vpop.permute.xlu0 %1363
        %1365 = vrot.lane.b32.xlu0 %v1247, 4
        %v1366 = vpop.permute.xlu0 %1365
        %1367 = vrot.lane.b32.xlu0 %v1248, 4
        %v1368 = vpop.permute.xlu0 %1367
        %1369 = vrot.lane.b32.xlu0 %v1249, 4
        %v1370 = vpop.permute.xlu0 %1369
        %1371 = vrot.lane.b32.xlu0 %v1250, 4
        %v1372 = vpop.permute.xlu0 %1371
        %1373 = vrot.lane.b32.xlu0 %v1251, 4
        %v1374 = vpop.permute.xlu0 %1373
        %1375 = vrot.lane.b32.xlu0 %v1252, 4
        %v1376 = vpop.permute.xlu0 %1375
        %1377 = vrot.lane.b32.xlu0 %v1265, 4
        %v1378 = vpop.permute.xlu0 %1377
        %1379 = vrot.lane.b32.xlu0 %v1266, 4
        %v1380 = vpop.permute.xlu0 %1379
        %1399 = vrot.lane.b32.xlu0 %v1328, 8
        %v1400 = vpop.permute.xlu0 %1399
        %1401 = vrot.lane.b32.xlu0 %v1351, 8
        %v1402 = vpop.permute.xlu0 %1401
        %1403 = vrot.lane.b32.xlu0 %v1330, 8
        %v1404 = vpop.permute.xlu0 %1403
        %1405 = vrot.lane.b32.xlu0 %v1352, 8
        %v1406 = vpop.permute.xlu0 %1405
        %1407 = vrot.lane.b32.xlu0 %v1332, 8
        %v1408 = vpop.permute.xlu0 %1407
        %1409 = vrot.lane.b32.xlu0 %v1353, 8
        %v1410 = vpop.permute.xlu0 %1409
        %1411 = vrot.lane.b32.xlu0 %v1334, 8
        %v1412 = vpop.permute.xlu0 %1411
        %1413 = vrot.lane.b32.xlu0 %v1354, 8
        %v1414 = vpop.permute.xlu0 %1413
        %1415 = vrot.lane.b32.xlu0 %v1336, 8
        %v1416 = vpop.permute.xlu0 %1415
        %1417 = vrot.lane.b32.xlu0 %v1355, 8
        %v1418 = vpop.permute.xlu0 %1417
        %1419 = vrot.lane.b32.xlu0 %v1338, 8
        %v1420 = vpop.permute.xlu0 %1419
        %1421 = vrot.lane.b32.xlu0 %v1356, 8
        %v1422 = vpop.permute.xlu0 %1421
        %v1435 = vsel %vm737, %v1321, %v1358
        %v1436 = vsel %vm737, %v1293, %v1360
        %v1437 = vsel %vm737, %v1322, %v1362
        %v1438 = vsel %vm737, %v1296, %v1364
        %v1439 = vsel %vm737, %v1323, %v1366
        %v1440 = vsel %vm737, %v1299, %v1368
        %v1441 = vsel %vm737, %v1324, %v1370
        %v1442 = vsel %vm737, %v1302, %v1372
        %v1443 = vsel %vm737, %v1325, %v1374
        %v1444 = vsel %vm737, %v1305, %v1376
        %v1445 = vsel %vm737, %v1326, %v1378
        %v1446 = vsel %vm737, %v1308, %v1380
        %v1447 = vsel %vm754, %v1435, %v1400
        %v1448 = vsel %vm754, %v1436, %v1402
        %v1449 = vsel %vm754, %v1437, %v1404
        %v1450 = vsel %vm754, %v1438, %v1406
        %v1451 = vsel %vm754, %v1439, %v1408
        %v1452 = vsel %vm754, %v1440, %v1410
        %v1453 = vsel %vm754, %v1441, %v1412
        %v1454 = vsel %vm754, %v1442, %v1414
        %v1455 = vsel %vm754, %v1443, %v1416
        %v1456 = vsel %vm754, %v1444, %v1418
        %v1457 = vsel %vm754, %v1445, %v1420
        %v1458 = vsel %vm754, %v1446, %v1422
        %v1459 = vld [vmem:[#allocation11] sm:$0xff]
        %v1460 = vld [vmem:[#allocation11 + $0x8] sm:$0xf]
        %s1461 = scalar_lea.vmem [#allocation11], 16
        %v1462 = vld [vmem:[%s1461] sm:$0xff]
        %v1463 = vld [vmem:[%s1461 + $0x8] sm:$0xf]
        %v1465 = vsel %vm776, %v1449, 0
        %v1468 = vsel %vm776, %v1450, 0
        %v1471 = vsel %vm776, %v1451, 0
        %v1474 = vsel %vm776, %v1452, 0
        %v1477 = vsel %vm776, %v1453, 0
        %v1480 = vsel %vm776, %v1454, 0
        %v1483 = vsel %vm776, %v1455, 0
        %v1486 = vsel %vm776, %v1456, 0
        %v1489 = vsel %vm813, %v1463, 0
        %1491 = vmatprep.subr.mxu0 0.0
        %1492 = vmatpush1.msra.mxu0 %v1462
        %1493 = vmatprep.subr.mxu0 0.0
        %1494 = vmatpush1.msra.mxu0 %v1489
        %1495 = vmatprep.subr.mxu0 0.0
        %1496 = vmatpush1.msra.mxu0 0.0
        %1497 = vmatprep.subr.mxu0 0.0
        %1498 = vmatpush1.msra.mxu0 0.0
        %1499 = vmatprep.subr.mxu0 0.0
        %1500 = vmatpush1.msra.mxu0 0.0
        %1501 = vmatprep.subr.mxu0 0.0
        %1502 = vmatpush1.msra.mxu0 0.0
        %1503 = vmatprep.subr.mxu0 0.0
        %1504 = vmatpush1.msra.mxu0 0.0
        %1505 = vmatprep.subr.mxu0 0.0
        %1506 = vmatpush1.msra.mxu0 0.0
        %1507 = vmatprep.subr.mxu0 0.0
        %1508 = vmatpush1.msra.mxu0 0.0
        %1509 = vmatprep.subr.mxu0 0.0
        %1510 = vmatpush1.msra.mxu0 0.0
        %1511 = vmatprep.subr.mxu0 0.0
        %1512 = vmatpush1.msra.mxu0 0.0
        %1513 = vmatprep.subr.mxu0 0.0
        %1514 = vmatpush1.msra.mxu0 0.0
        %1515 = vmatprep.subr.mxu0 0.0
        %1516 = vmatpush1.msra.mxu0 0.0
        %1517 = vmatprep.subr.mxu0 0.0
        %1518 = vmatpush1.msra.mxu0 0.0
        %1519 = vmatprep.subr.mxu0 0.0
        %1520 = vmatpush1.msra.mxu0 0.0
        %1521 = vmatprep.subr.mxu0 0.0
        %1522 = vmatpush1.msra.mxu0 0.0
        %1523 = vmatprep.subr.mxu0 0.0
        %1524 = vmatpush1.msra.mxu0 0.0
        %1525 = vmatprep.subr.mxu0 0.0
        %1526 = vmatpush1.msra.mxu0 0.0
        %1527 = vmatprep.subr.mxu0 0.0
        %1528 = vmatpush1.msra.mxu0 0.0
        %1529 = vmatprep.subr.mxu0 0.0
        %1530 = vmatpush1.msra.mxu0 0.0
        %1531 = vmatprep.subr.mxu0 0.0
        %1532 = vmatpush1.msra.mxu0 0.0
        %1533 = vmatprep.subr.mxu0 0.0
        %1534 = vmatpush1.msra.mxu0 0.0
        %1535 = vmatprep.subr.mxu0 0.0
        %1536 = vmatpush1.msra.mxu0 0.0
        %1537 = vmatprep.subr.mxu0 0.0
        %1538 = vmatpush1.msra.mxu0 0.0
        %1539 = vmatprep.subr.mxu0 0.0
        %1540 = vmatpush1.msra.mxu0 0.0
        %1541 = vmatprep.subr.mxu0 0.0
        %1542 = vmatpush1.msra.mxu0 0.0
        %1543 = vmatprep.subr.mxu0 0.0
        %1544 = vmatpush1.msra.mxu0 0.0
        %1545 = vmatprep.subr.mxu0 0.0
        %1546 = vmatpush1.msra.mxu0 0.0
        %1547 = vmatprep.subr.mxu0 0.0
        %1548 = vmatpush1.msra.mxu0 0.0
        %1549 = vmatprep.subr.mxu0 0.0
        %1550 = vmatpush1.msra.mxu0 0.0
        %1551 = vmatprep.subr.mxu0 0.0
        %1552 = vmatpush1.msra.mxu0 0.0
        %1553 = vmatprep.subr.mxu0 0.0
        %1554 = vmatpush1.msra.mxu0 0.0
        %1555 = vmatprep.mubr.f32.mxu0 0.0
        %1556 = vmatmul.mubr.f32.gmra.mrb[0].mxu0 %v1465
        %v1557 = vpop.f32.mrb[0].mxu0
        %v1558 = vadd.f32 0.0, %v1557
        %v1559 = vpop.f32.mrb[0].mxu0
        %1560 = vmatprep.mubr.f32.mxu0 0.0
        %1561 = vmatmul.mubr.f32.gmra.mrb[0].mxu0 %v1468
        %v1562 = vpop.f32.mrb[0].mxu0
        %v1563 = vadd.f32 0.0, %v1562
        %v1564 = vpop.f32.mrb[0].mxu0
        %1565 = vmatprep.mubr.f32.mxu0 0.0
        %1566 = vmatmul.mubr.f32.gmra.mrb[0].mxu0 %v1471
        %v1567 = vpop.f32.mrb[0].mxu0
        %v1568 = vadd.f32 0.0, %v1567
        %v1569 = vpop.f32.mrb[0].mxu0
        %1570 = vmatprep.mubr.f32.mxu0 0.0
        %1571 = vmatmul.mubr.f32.gmra.mrb[0].mxu0 %v1474
        %v1572 = vpop.f32.mrb[0].mxu0
        %v1573 = vadd.f32 0.0, %v1572
        %v1574 = vpop.f32.mrb[0].mxu0
        %1575 = vmatprep.mubr.f32.mxu0 0.0
        %1576 = vmatmul.mubr.f32.gmra.mrb[0].mxu0 %v1477
        %v1577 = vpop.f32.mrb[0].mxu0
        %v1578 = vadd.f32 0.0, %v1577
        %v1579 = vpop.f32.mrb[0].mxu0
        %1580 = vmatprep.mubr.f32.mxu0 0.0
        %1581 = vmatmul.mubr.f32.gmra.mrb[0].mxu0 %v1480
        %v1582 = vpop.f32.mrb[0].mxu0
        %v1583 = vadd.f32 0.0, %v1582
        %v1584 = vpop.f32.mrb[0].mxu0
        %1585 = vmatprep.mubr.f32.mxu0 0.0
        %1586 = vmatmul.mubr.f32.gmra.mrb[0].mxu0 %v1483
        %v1587 = vpop.f32.mrb[0].mxu0
        %v1588 = vadd.f32 0.0, %v1587
        %v1589 = vpop.f32.mrb[0].mxu0
        %1590 = vmatprep.mubr.f32.mxu0 0.0
        %1591 = vmatmul.mubr.f32.gmra.mrb[0].mxu0 %v1486
        %v1592 = vpop.f32.mrb[0].mxu0
        %v1593 = vadd.f32 0.0, %v1592
        %v1594 = vpop.f32.mrb[0].mxu0
        %1595 = vdwg.mxu0
        %v1597 = vsel %vm776, %v1447, 0
        %v1600 = vsel %vm776, %v1448, 0
        %v1603 = vsel %vm813, %v1460, 0
        %1605 = vmatprep.subr.mxu0 0.0
        %1606 = vmatpush1.msra.mxu0 %v1459
        %1607 = vmatprep.subr.mxu0 0.0
        %1608 = vmatpush1.msra.mxu0 %v1603
        %1609 = vmatprep.subr.mxu0 0.0
        %1610 = vmatpush1.msra.mxu0 0.0
        %1611 = vmatprep.subr.mxu0 0.0
        %1612 = vmatpush1.msra.mxu0 0.0
        %1613 = vmatprep.subr.mxu0 0.0
        %1614 = vmatpush1.msra.mxu0 0.0
        %1615 = vmatprep.subr.mxu0 0.0
        %1616 = vmatpush1.msra.mxu0 0.0
        %1617 = vmatprep.subr.mxu0 0.0
        %1618 = vmatpush1.msra.mxu0 0.0
        %1619 = vmatprep.subr.mxu0 0.0
        %1620 = vmatpush1.msra.mxu0 0.0
        %1621 = vmatprep.subr.mxu0 0.0
        %1622 = vmatpush1.msra.mxu0 0.0
        %1623 = vmatprep.subr.mxu0 0.0
        %1624 = vmatpush1.msra.mxu0 0.0
        %1625 = vmatprep.subr.mxu0 0.0
        %1626 = vmatpush1.msra.mxu0 0.0
        %1627 = vmatprep.subr.mxu0 0.0
        %1628 = vmatpush1.msra.mxu0 0.0
        %1629 = vmatprep.subr.mxu0 0.0
        %1630 = vmatpush1.msra.mxu0 0.0
        %1631 = vmatprep.subr.mxu0 0.0
        %1632 = vmatpush1.msra.mxu0 0.0
        %1633 = vmatprep.subr.mxu0 0.0
        %1634 = vmatpush1.msra.mxu0 0.0
        %1635 = vmatprep.subr.mxu0 0.0
        %1636 = vmatpush1.msra.mxu0 0.0
        %1637 = vmatprep.subr.mxu0 0.0
        %1638 = vmatpush1.msra.mxu0 0.0
        %1639 = vmatprep.subr.mxu0 0.0
        %1640 = vmatpush1.msra.mxu0 0.0
        %1641 = vmatprep.subr.mxu0 0.0
        %1642 = vmatpush1.msra.mxu0 0.0
        %1643 = vmatprep.subr.mxu0 0.0
        %1644 = vmatpush1.msra.mxu0 0.0
        %1645 = vmatprep.subr.mxu0 0.0
        %1646 = vmatpush1.msra.mxu0 0.0
        %1647 = vmatprep.subr.mxu0 0.0
        %1648 = vmatpush1.msra.mxu0 0.0
        %1649 = vmatprep.subr.mxu0 0.0
        %1650 = vmatpush1.msra.mxu0 0.0
        %1651 = vmatprep.subr.mxu0 0.0
        %1652 = vmatpush1.msra.mxu0 0.0
        %1653 = vmatprep.subr.mxu0 0.0
        %1654 = vmatpush1.msra.mxu0 0.0
        %1655 = vmatprep.subr.mxu0 0.0
        %1656 = vmatpush1.msra.mxu0 0.0
        %1657 = vmatprep.subr.mxu0 0.0
        %1658 = vmatpush1.msra.mxu0 0.0
        %1659 = vmatprep.subr.mxu0 0.0
        %1660 = vmatpush1.msra.mxu0 0.0
        %1661 = vmatprep.subr.mxu0 0.0
        %1662 = vmatpush1.msra.mxu0 0.0
        %1663 = vmatprep.subr.mxu0 0.0
        %1664 = vmatpush1.msra.mxu0 0.0
        %1665 = vmatprep.subr.mxu0 0.0
        %1666 = vmatpush1.msra.mxu0 0.0
        %1667 = vmatprep.subr.mxu0 0.0
        %1668 = vmatpush1.msra.mxu0 0.0
        %1669 = vmatprep.mubr.f32.mxu0 0.0
        %1670 = vmatmul.mubr.f32.gmra.mrb[0].mxu0 %v1597
        %v1671 = vpop.f32.mrb[0].mxu0
        %v1672 = vadd.f32 %v1558, %v1671
        %v1673 = vpop.f32.mrb[0].mxu0
        %1674 = vmatprep.mubr.f32.mxu0 0.0
        %1675 = vmatmul.mubr.f32.gmra.mrb[0].mxu0 %v1600
        %v1676 = vpop.f32.mrb[0].mxu0
        %v1677 = vadd.f32 %v1563, %v1676
        %v1678 = vpop.f32.mrb[0].mxu0
        %1679 = vmatprep.mubr.f32.mxu0 0.0
        %1680 = vmatmul.mubr.f32.gmra.mrb[0].mxu0 %v1465
        %v1681 = vpop.f32.mrb[0].mxu0
        %v1682 = vadd.f32 %v1568, %v1681
        %v1683 = vpop.f32.mrb[0].mxu0
        %1684 = vmatprep.mubr.f32.mxu0 0.0
        %1685 = vmatmul.mubr.f32.gmra.mrb[0].mxu0 %v1468
        %v1686 = vpop.f32.mrb[0].mxu0
        %v1687 = vadd.f32 %v1573, %v1686
        %v1688 = vpop.f32.mrb[0].mxu0
        %1689 = vmatprep.mubr.f32.mxu0 0.0
        %1690 = vmatmul.mubr.f32.gmra.mrb[0].mxu0 %v1471
        %v1691 = vpop.f32.mrb[0].mxu0
        %v1692 = vadd.f32 %v1578, %v1691
        %v1693 = vpop.f32.mrb[0].mxu0
        %1694 = vmatprep.mubr.f32.mxu0 0.0
        %1695 = vmatmul.mubr.f32.gmra.mrb[0].mxu0 %v1474
        %v1696 = vpop.f32.mrb[0].mxu0
        %v1697 = vadd.f32 %v1583, %v1696
        %v1698 = vpop.f32.mrb[0].mxu0
        %1699 = vmatprep.mubr.f32.mxu0 0.0
        %1700 = vmatmul.mubr.f32.gmra.mrb[0].mxu0 %v1477
        %v1701 = vpop.f32.mrb[0].mxu0
        %v1702 = vadd.f32 %v1588, %v1701
        %v1703 = vpop.f32.mrb[0].mxu0
        %1704 = vmatprep.mubr.f32.mxu0 0.0
        %1705 = vmatmul.mubr.f32.gmra.mrb[0].mxu0 %v1480
        %v1706 = vpop.f32.mrb[0].mxu0
        %v1707 = vadd.f32 %v1593, %v1706
        %v1708 = vpop.f32.mrb[0].mxu0
        %1709 = vdwg.mxu0
        %s1710 = scalar_lea.vmem [#allocation11], 32
        %v1711 = vld [vmem:[%s1710] sm:$0xff]
        %v1712 = vld [vmem:[%s1710 + $0x8] sm:$0xf]
        %v1714 = vsel %vm776, %v1457, 0
        %v1717 = vsel %vm776, %v1458, 0
        %v1720 = vsel %vm813, %v1712, 0
        %1722 = vmatprep.subr.mxu0 0.0
        %1723 = vmatpush1.msra.mxu0 %v1711
        %1724 = vmatprep.subr.mxu0 0.0
        %1725 = vmatpush1.msra.mxu0 %v1720
        %1726 = vmatprep.subr.mxu0 0.0
        %1727 = vmatpush1.msra.mxu0 0.0
        %1728 = vmatprep.subr.mxu0 0.0
        %1729 = vmatpush1.msra.mxu0 0.0
        %1730 = vmatprep.subr.mxu0 0.0
        %1731 = vmatpush1.msra.mxu0 0.0
        %1732 = vmatprep.subr.mxu0 0.0
        %1733 = vmatpush1.msra.mxu0 0.0
        %1734 = vmatprep.subr.mxu0 0.0
        %1735 = vmatpush1.msra.mxu0 0.0
        %1736 = vmatprep.subr.mxu0 0.0
        %1737 = vmatpush1.msra.mxu0 0.0
        %1738 = vmatprep.subr.mxu0 0.0
        %1739 = vmatpush1.msra.mxu0 0.0
        %1740 = vmatprep.subr.mxu0 0.0
        %1741 = vmatpush1.msra.mxu0 0.0
        %1742 = vmatprep.subr.mxu0 0.0
        %1743 = vmatpush1.msra.mxu0 0.0
        %1744 = vmatprep.subr.mxu0 0.0
        %1745 = vmatpush1.msra.mxu0 0.0
        %1746 = vmatprep.subr.mxu0 0.0
        %1747 = vmatpush1.msra.mxu0 0.0
        %1748 = vmatprep.subr.mxu0 0.0
        %1749 = vmatpush1.msra.mxu0 0.0
        %1750 = vmatprep.subr.mxu0 0.0
        %1751 = vmatpush1.msra.mxu0 0.0
        %1752 = vmatprep.subr.mxu0 0.0
        %1753 = vmatpush1.msra.mxu0 0.0
        %1754 = vmatprep.subr.mxu0 0.0
        %1755 = vmatpush1.msra.mxu0 0.0
        %1756 = vmatprep.subr.mxu0 0.0
        %1757 = vmatpush1.msra.mxu0 0.0
        %1758 = vmatprep.subr.mxu0 0.0
        %1759 = vmatpush1.msra.mxu0 0.0
        %1760 = vmatprep.subr.mxu0 0.0
        %1761 = vmatpush1.msra.mxu0 0.0
        %1762 = vmatprep.subr.mxu0 0.0
        %1763 = vmatpush1.msra.mxu0 0.0
        %1764 = vmatprep.subr.mxu0 0.0
        %1765 = vmatpush1.msra.mxu0 0.0
        %1766 = vmatprep.subr.mxu0 0.0
        %1767 = vmatpush1.msra.mxu0 0.0
        %1768 = vmatprep.subr.mxu0 0.0
        %1769 = vmatpush1.msra.mxu0 0.0
        %1770 = vmatprep.subr.mxu0 0.0
        %1771 = vmatpush1.msra.mxu0 0.0
        %1772 = vmatprep.subr.mxu0 0.0
        %1773 = vmatpush1.msra.mxu0 0.0
        %1774 = vmatprep.subr.mxu0 0.0
        %1775 = vmatpush1.msra.mxu0 0.0
        %1776 = vmatprep.subr.mxu0 0.0
        %1777 = vmatpush1.msra.mxu0 0.0
        %1778 = vmatprep.subr.mxu0 0.0
        %1779 = vmatpush1.msra.mxu0 0.0
        %1780 = vmatprep.subr.mxu0 0.0
        %1781 = vmatpush1.msra.mxu0 0.0
        %1782 = vmatprep.subr.mxu0 0.0
        %1783 = vmatpush1.msra.mxu0 0.0
        %1784 = vmatprep.subr.mxu0 0.0
        %1785 = vmatpush1.msra.mxu0 0.0
        %1786 = vmatprep.mubr.f32.mxu0 0.0
        %1787 = vmatmul.mubr.f32.gmra.mrb[0].mxu0 %v1471
        %v1788 = vpop.f32.mrb[0].mxu0
        %v1789 = vadd.f32 0.0, %v1788
        %v1790 = vpop.f32.mrb[0].mxu0
        %1791 = vmatprep.mubr.f32.mxu0 0.0
        %1792 = vmatmul.mubr.f32.gmra.mrb[0].mxu0 %v1474
        %v1793 = vpop.f32.mrb[0].mxu0
        %v1794 = vadd.f32 0.0, %v1793
        %v1795 = vpop.f32.mrb[0].mxu0
        %1796 = vmatprep.mubr.f32.mxu0 0.0
        %1797 = vmatmul.mubr.f32.gmra.mrb[0].mxu0 %v1477
        %v1798 = vpop.f32.mrb[0].mxu0
        %v1799 = vadd.f32 0.0, %v1798
        %v1800 = vpop.f32.mrb[0].mxu0
        %1801 = vmatprep.mubr.f32.mxu0 0.0
        %1802 = vmatmul.mubr.f32.gmra.mrb[0].mxu0 %v1480
        %v1803 = vpop.f32.mrb[0].mxu0
        %v1804 = vadd.f32 0.0, %v1803
        %v1805 = vpop.f32.mrb[0].mxu0
        %1806 = vmatprep.mubr.f32.mxu0 0.0
        %1807 = vmatmul.mubr.f32.gmra.mrb[0].mxu0 %v1483
        %v1808 = vpop.f32.mrb[0].mxu0
        %v1809 = vadd.f32 0.0, %v1808
        %v1810 = vpop.f32.mrb[0].mxu0
        %1811 = vmatprep.mubr.f32.mxu0 0.0
        %1812 = vmatmul.mubr.f32.gmra.mrb[0].mxu0 %v1486
        %v1813 = vpop.f32.mrb[0].mxu0
        %v1814 = vadd.f32 0.0, %v1813
        %v1815 = vpop.f32.mrb[0].mxu0
        %1816 = vmatprep.mubr.f32.mxu0 0.0
        %1817 = vmatmul.mubr.f32.gmra.mrb[0].mxu0 %v1714
        %v1818 = vpop.f32.mrb[0].mxu0
        %v1819 = vadd.f32 0.0, %v1818
        %v1820 = vpop.f32.mrb[0].mxu0
        %1821 = vmatprep.mubr.f32.mxu0 0.0
        %1822 = vmatmul.mubr.f32.gmra.mrb[0].mxu0 %v1717
        %v1823 = vpop.f32.mrb[0].mxu0
        %v1824 = vadd.f32 0.0, %v1823
        %v1825 = vpop.f32.mrb[0].mxu0
        %1826 = vdwg.mxu0
        %v1827 = vadd.f32 %v1672, %v1789
        %v1828 = vadd.f32 %v1677, %v1794
        %v1829 = vadd.f32 %v1682, %v1799
        %v1830 = vadd.f32 %v1687, %v1804
        %v1831 = vadd.f32 %v1692, %v1809
        %v1832 = vadd.f32 %v1697, %v1814
        %v1833 = vadd.f32 %v1702, %v1819
        %v1834 = vadd.f32 %v1707, %v1824
        %v1836 = vlaneseq
        %v1837 = vshrl.u32 %v1836, 7
        %v1838 = vsub.s32 0, %v1837
        %v1839 = vrot.slane %v510, %v1838
        %v1841 = vadd.f32 %v1827, %v1839
        %v1842 = vadd.f32 %v1828, %v1839
        %v1843 = vadd.f32 %v1829, %v1839
        %v1844 = vadd.f32 %v1830, %v1839
        %v1845 = vadd.f32 %v1831, %v1839
        %v1846 = vadd.f32 %v1832, %v1839
        %v1847 = vadd.f32 %v1833, %v1839
        %v1848 = vadd.f32 %v1834, %v1839
        %v1849 = vadd.f32 %v1841, %v497
        %v1850 = vadd.f32 %v1842, %v498
        %v1851 = vadd.f32 %v1843, %v499
        %v1852 = vadd.f32 %v1844, %v500
        %v1853 = vadd.f32 %v1845, %v501
        %v1854 = vadd.f32 %v1846, %v502
        %v1855 = vadd.f32 %v1847, %v503
        %v1856 = vadd.f32 %v1848, %v504
        %1857 = vst.msk [vmem:[%s480] sm:$0xff] %vm737, %v1849
        %1858 = vst.msk [vmem:[%s480 + $0x8] sm:$0xff] %vm737, %v1850
        %1859 = vst.msk [vmem:[%s480 + $0x10] sm:$0xff] %vm737, %v1851
        %1860 = vst.msk [vmem:[%s480 + $0x18] sm:$0xff] %vm737, %v1852
        %1861 = vst.msk [vmem:[%s480 + $0x20] sm:$0xff] %vm737, %v1853
        %1862 = vst.msk [vmem:[%s480 + $0x28] sm:$0xff] %vm737, %v1854
        %1863 = vst.msk [vmem:[%s480 + $0x30] sm:$0xff] %vm737, %v1855
        %1864 = vst.msk [vmem:[%s480 + $0x38] sm:$0xff] %vm737, %v1856
        %s1865 = sand.u32 %s235, 1
        %s1866 = scalar_lea.sflag [#allocation4], %s1865
        %s1867 = sand.u32 %s235, 1
        %s1868 = smul.addr %s1867, 64
        %s1869 = scalar_lea.vmem [#allocation14], %s1868
        // Predicated region
        $region77: #{tpu_custom_call.1} parent=47 // pred_check
          %p1870 = pneg %p245
        $region78: #{tpu_custom_call.1} parent=47 // pred_check_branch
          %1872 = sbr.rel (%p1870) target = $region80
        $region79: #{tpu_custom_call.1} parent=47 // pred_region
          %s1873 = smul.u32 4, %s34
          %s1875 = ssub.s32 1024, 1024
          %1876 = vsyncadd %s1866, %s1875
          %s1877 = smul.addr %s1873, 2
          %s1878 = smul.addr %s33, 32
          %s1879 = sadd.s32 %s1877, %s1878
          %s1880 = smul.addr %s1879, 128
          %s1881 = scalar_lea.hbm %s7, %s1880
          %s1882 = sshll.u32 %s1869, 4
          %s1883 = int_to_ptr.vmem [resolvable:$true] %s1882
          %1888 = dma.vmem_to_hbm [thread:$0]  %s1883, 1024, %s1881, %s1866, 128, 128, 8
        $region80: #{tpu_custom_call.1} parent=47 // pred_fallthru
          _
      $region48: #{tpu_custom_call.1} parent=5 // pred_fallthru
        _
      %p1889 = scmp.le.s32.totalorder 2, %s24
      // Predicated region
      $region81: #{tpu_custom_call.1} parent=5 // pred_check
        %p1890 = pneg %p1889
      $region82: #{tpu_custom_call.1} parent=5 // pred_check_branch
        %1892 = sbr.rel (%p1890) target = $region84
      $region83: #{tpu_custom_call.1} parent=5 // pred_region
        %s1893 = ssub.s32 %s24, 2
        // Predicated region
        $region85: #{tpu_custom_call.1} parent=83 // pred_check
          %p1894 = pneg %p251
        $region86: #{tpu_custom_call.1} parent=83 // pred_check_branch
          %1896 = sbr.rel (%p1894) target = $region88
        $region87: #{tpu_custom_call.1} parent=83 // pred_region
          %s1897 = sand.u32 %s236, 1
          %s1898 = scalar_lea.sflag [#allocation4], %s1897
          %s1899 = sand.u32 %s236, 1
          %s1900 = smul.addr %s1899, 64
          %s1901 = scalar_lea.vmem [#allocation14], %s1900
          %1902 = dma.done %s1898, 1024
        $region88: #{tpu_custom_call.1} parent=83 // pred_fallthru
          _
      $region84: #{tpu_custom_call.1} parent=5 // pred_fallthru
        _
    $region6: #{tpu_custom_call.1} parent=1 // loop_footer
      %s28 = sadd.s32 1, %s24
    $region7: #{tpu_custom_call.1} parent=1 // loop_footer_branch
      %23 = sbr.rel target = $region3
    $region8: #{tpu_custom_call.1} parent=1 // loop_exit
      _
    %1903 = vsyncpa [#allocation3], 1
    %s1904 = scalar_lea.sflag [#allocation3], 1
    %1905 = vsyncpa %s1904, 1
    %1906 = vsyncpa [#allocation6], 1
    %s1907 = scalar_lea.sflag [#allocation6], 1
    %1908 = vsyncpa %s1907, 1
    %1909 = vsyncpa [#allocation9], 1
    %1910 = vsyncpa [#allocation12], 1
    %1911 = vsyncpa [#allocation4], 1
    %s1912 = scalar_lea.sflag [#allocation4], 1
    %1913 = vsyncpa %s1912, 1

</llo_original>
